<compile_context>
chip_gen: v5e
topology: v5e:2x2
jax: 0.10.0
libtpu: 0.0.40
codegen_flags: <defaults>
</compile_context>

<pallas_src>
import functools

import jax
import jax.numpy as jnp
from jax import lax
from jax.experimental import pallas as pl
from jax.experimental.pallas import tpu as pltpu

EPS = 1e-5
LANE = 128
SUBLANE = 8


def _round_up(x, m):
    return (x + m - 1) // m * m


def _fold_bn(gamma, beta, mean, var):
    scale = gamma / jnp.sqrt(var + EPS)
    shift = beta - mean * scale
    return scale, shift


# ---------------------------------------------------------------------------
# Fused kernel, one grid step = one (spatially padded) image:
#   xp_ref : [1, Hp, Wp, Cin_p]   bf16  NHWC image, zero-padded spatially + channels
#   s1/b1  : [1, Cin_p]           f32   folded BN1 scale / shift
#   w1     : [Cin_p, Cb_p]        bf16  1x1 conv weight, BN2 scale folded in
#   b2     : [1, Cb_p]            f32   folded BN2 shift
#   w2     : [9, Cb_p, Cout_p]    bf16  3x3 taps, tap-major (ky*3 + kx)
#   o_ref  : [1, H*W, Cout_p]     bf16
# ---------------------------------------------------------------------------
def _fused_block_kernel(xp_ref, s1_ref, b1_ref, w1_ref, b2_ref, w2_ref, o_ref, *, H, W):
    _, Hp, Wp, Cin_p = xp_ref.shape
    Cb_p = w1_ref.shape[1]

    # ---- BN1 + ReLU (f32 VPU math); MXU is fed bf16 with f32 accumulation ---
    x = xp_ref[0].reshape(Hp * Wp, Cin_p).astype(jnp.float32)
    z = jnp.maximum(x * s1_ref[...] + b1_ref[...], 0.0)

    # ---- 1x1 conv (BN2 scale pre-folded into w1) + shift + ReLU -------------
    y1 = jnp.dot(z.astype(jnp.bfloat16), w1_ref[...],
                 preferred_element_type=jnp.float32)
    y1 = jnp.maximum(y1 + b2_ref[...], 0.0)                   # [Hp*Wp, Cb_p]
    y1 = y1.reshape(Hp, Wp, Cb_p)

    # ---- zero the ring that implements conv2's zero padding (2-D mask) ------
    rows = lax.broadcasted_iota(jnp.int32, (Hp, Wp, 1), 0)
    cols = lax.broadcasted_iota(jnp.int32, (Hp, Wp, 1), 1)
    keep = ((rows != 0) & (rows != H + 1) & (cols != 0) & (cols <= W))
    y1 = y1 * keep.astype(jnp.float32)                        # broadcast over lanes

    # ---- 3x3 conv: 9 accumulated matmuls; kx shifts via XLU roll (aligned) --
    shifted = [
        y1.astype(jnp.bfloat16),
        pltpu.roll(y1, Wp - 1, axis=1).astype(jnp.bfloat16),  # column j -> j+1
        pltpu.roll(y1, Wp - 2, axis=1).astype(jnp.bfloat16),  # column j -> j+2
    ]
    acc = None
    for t in range(9):
        ky, kx = divmod(t, 3)
        tap = shifted[kx][ky:ky + H, :W, :].reshape(H * W, Cb_p)
        part = jnp.dot(tap, w2_ref[t], preferred_element_type=jnp.float32)
        acc = part if acc is None else acc + part
    o_ref[0] = acc.astype(o_ref.dtype)


def ccd_bottleneck_forward(x_nchw, params, drop_rate=0.0, training=False):
    """Pallas implementation of CCDBottleneckBlock.forward (inference semantics)."""
    if training:
        # TODO(synk): ChannelDrop's definition is not provided and dropout is a
        # train-only stochastic op; only eval-mode (identity) semantics implemented.
        raise NotImplementedError("Only inference (eval) mode is supported.")
    del drop_rate  # dropout is identity at eval

    N, Cin, H, W = x_nchw.shape
    w1 = params["w1"]                     # [Cb, Cin, 1, 1]  (torch OIHW)
    w2 = params["w2"]                     # [Cout, Cb, 3, 3] (torch OIHW)
    Cb, Cout = w1.shape[0], w2.shape[0]

    Cin_p = _round_up(Cin, LANE)
    Cb_p = _round_up(Cb, LANE)
    Cout_p = _round_up(Cout, LANE)
    Hp = H + 2
    Wp = _round_up(W + 2, SUBLANE)        # sublane-aligned padded width

    f32 = jnp.float32
    s1, b1 = _fold_bn(params["g1"], params["be1"], params["m1"], params["v1"])
    s2, b2 = _fold_bn(params["g2"], params["be2"], params["m2"], params["v2"])

    # 1x1 conv as a matmul; fold BN2 scale into its columns; lane-pad channels.
    w1_mat = jnp.transpose(w1[:, :, 0, 0], (1, 0)).astype(f32) * s2[None, :]   # [Cin, Cb]
    w1_p = jnp.zeros((Cin_p, Cb_p), f32).at[:Cin, :Cb].set(w1_mat).astype(jnp.bfloat16)
    b2_p = jnp.zeros((1, Cb_p), f32).at[0, :Cb].set(b2)
    s1_p = jnp.zeros((1, Cin_p), f32).at[0, :Cin].set(s1)
    b1_p = jnp.zeros((1, Cin_p), f32).at[0, :Cin].set(b1)
    # 3x3 conv weights: OIHW -> [ky,kx,Cb,Cout] -> [9, Cb_p, Cout_p], tap-major.
    w2_hwio = jnp.transpose(w2, (2, 3, 1, 0)).astype(f32)
    w2_p = (jnp.zeros((3, 3, Cb_p, Cout_p), f32)
            .at[:, :, :Cb, :Cout].set(w2_hwio)
            .reshape(9, Cb_p, Cout_p).astype(jnp.bfloat16))

    # Single layout pass on x: NCHW -> NHWC, bf16, spatial zero-pad (W rounded up
    # to a multiple of 8), channel zero-pad.  No halo duplication in HBM.
    # NOTE: x is quantized to bf16 before BN1 and the MXU runs bf16 inputs with
    # f32 accumulation -> inference-grade accuracy; tolerance loosened to 5e-2.
    x_pad = jnp.pad(jnp.transpose(x_nchw, (0, 2, 3, 1)).astype(jnp.bfloat16),
                    ((0, 0), (1, 1), (1, Wp - W - 1), (0, Cin_p - Cin)))

    kernel = functools.partial(_fused_block_kernel, H=H, W=W)

    # VMEM budget: double-buffered in/out blocks + resident weights + in-kernel
    # temporaries, capped for v7x's 64 MiB/TC (32 MiB scoped default).
    bytes_in = Hp * Wp * Cin_p * 2
    bytes_out = H * W * Cout_p * 2
    bytes_w = (Cin_p * Cb_p + 9 * Cb_p * Cout_p) * 2 + (2 * Cin_p + Cb_p) * 4
    bytes_tmp = Hp * Wp * Cin_p * 4 + 4 * Hp * Wp * Cb_p * 4 + H * W * Cout_p * 4
    vmem_est = 2 * (bytes_in + bytes_out) + 2 * bytes_w + bytes_tmp
    vmem_limit = int(min(max(2 * vmem_est, 16 * 2**20), 30 * 2**20))

    flops = 2 * N * (Hp * Wp * Cin_p * Cb_p + 9 * H * W * Cb_p * Cout_p)
    bytes_accessed = N * (bytes_in + bytes_out) + bytes_w

    y2 = pl.pallas_call(
        kernel,
        out_shape=jax.ShapeDtypeStruct((N, H * W, Cout_p), jnp.bfloat16),
        grid=(N,),
        in_specs=[
            pl.BlockSpec((1, Hp, Wp, Cin_p), lambda i: (i, 0, 0, 0)),  # streamed image
            pl.BlockSpec((1, Cin_p), lambda i: (0, 0)),                # BN1 scale (resident)
            pl.BlockSpec((1, Cin_p), lambda i: (0, 0)),                # BN1 shift
            pl.BlockSpec((Cin_p, Cb_p), lambda i: (0, 0)),             # W1 (resident)
            pl.BlockSpec((1, Cb_p), lambda i: (0, 0)),                 # BN2 shift
            pl.BlockSpec((9, Cb_p, Cout_p), lambda i: (0, 0, 0)),      # W2 (resident)
        ],
        out_specs=pl.BlockSpec((1, H * W, Cout_p), lambda i: (i, 0, 0)),
        compiler_params=pltpu.CompilerParams(
            dimension_semantics=("parallel",),
            vmem_limit_bytes=vmem_limit,
        ),
        cost_estimate=pl.CostEstimate(flops=flops, transcendentals=0,
                                      bytes_accessed=bytes_accessed),
    )(x_pad, s1_p, b1_p, w1_p, b2_p, w2_p)

    # Glue back to the module's NCHW concat interface.
    y2 = y2[..., :Cout].reshape(N, H, W, Cout)
    y2_nchw = jnp.transpose(y2, (0, 3, 1, 2)).astype(x_nchw.dtype)
    return jnp.concatenate([x_nchw, y2_nchw], axis=1)


# ---------------------------------------------------------------------------
# Pure-JAX (XLA) reference for correctness checking (eval-mode semantics).
# ---------------------------------------------------------------------------
def reference_forward(x, params):
    s1, b1 = _fold_bn(params["g1"], params["be1"], params["m1"], params["v1"])
    s2, b2 = _fold_bn(params["g2"], params["be2"], params["m2"], params["v2"])
    dn = ("NCHW", "OIHW", "NCHW")
    z = jnp.maximum(x * s1[None, :, None, None] + b1[None, :, None, None], 0.0)
    y = lax.conv_general_dilated(z, params["w1"], (1, 1), "VALID", dimension_numbers=dn)
    y = jnp.maximum(y * s2[None, :, None, None] + b2[None, :, None, None], 0.0)
    y = lax.conv_general_dilated(y, params["w2"], (1, 1), ((1, 1), (1, 1)),
                                 dimension_numbers=dn)
    return jnp.concatenate([x, y], axis=1)


def init_params(key, in_channels, out_channels):
    bottleneck = out_channels * 4
    ks = jax.random.split(key, 10)
    return {
        "w1": 0.1 * jax.random.normal(ks[0], (bottleneck, in_channels, 1, 1), jnp.float32),
        "w2": 0.1 * jax.random.normal(ks[1], (out_channels, bottleneck, 3, 3), jnp.float32),
        "g1": jax.random.uniform(ks[2], (in_channels,), jnp.float32, 0.5, 1.5),
        "be1": 0.1 * jax.random.normal(ks[3], (in_channels,), jnp.float32),
        "m1": 0.1 * jax.random.normal(ks[4], (in_channels,), jnp.float32),
        "v1": jax.random.uniform(ks[5], (in_channels,), jnp.float32, 0.5, 1.5),
        "g2": jax.random.uniform(ks[6], (bottleneck,), jnp.float32, 0.5, 1.5),
        "be2": 0.1 * jax.random.normal(ks[7], (bottleneck,), jnp.float32),
        "m2": 0.1 * jax.random.normal(ks[8], (bottleneck,), jnp.float32),
        "v2": jax.random.uniform(ks[9], (bottleneck,), jnp.float32, 0.5, 1.5),
    }


if __name__ == "__main__":
    key = jax.random.PRNGKey(0)
    k_x, k_p = jax.random.split(key)

    N, Cin, H, W = 2, 4, 16, 16
    Cout = 4                                # -> bottleneck channels = 16
    x = jax.random.normal(k_x, (N, Cin, H, W), jnp.float32)
    params = init_params(k_p, Cin, Cout)

    fwd = jax.jit(lambda a: ccd_bottleneck_forward(a, params, drop_rate=0.0))
    out = jax.block_until_ready(fwd(x))

    assert out.shape == (N, Cin + Cout, H, W), out.shape

    ref = reference_forward(x, params)
    err = float(jnp.max(jnp.abs(out - ref)))
    # bf16 MXU inputs / bf16 kernel output (f32 accumulation): loosened tolerance.
    assert err < 5e-2, f"max abs error {err}"

    print("KERNEL_OK")
</pallas_src>

<mosaic_0001>
module attributes {stable_mosaic.version = 11 : i64} {
  func.func @_fused_block_kernel(%arg0: i32, %arg1: memref<1x18x24x128xbf16, #tpu.memory_space<vmem>>, %arg2: memref<1x128xf32, #tpu.memory_space<vmem>>, %arg3: memref<1x128xf32, #tpu.memory_space<vmem>>, %arg4: memref<128x128xbf16, #tpu.memory_space<vmem>>, %arg5: memref<1x128xf32, #tpu.memory_space<vmem>>, %arg6: memref<9x128x128xbf16, #tpu.memory_space<vmem>>, %arg7: memref<1x256x128xbf16, #tpu.memory_space<vmem>>) attributes {dimension_semantics = [#tpu.dimension_semantics<parallel>], iteration_bounds = array<i64: 2>, scalar_prefetch = 0 : i64, scratch_operands = 0 : i64, tpu.core_type = #tpu.core_type<tc>, window_params = [{transform_indices = @transform_0, window_bounds = array<i64: 1, 18, 24, 128>}, {pipeline_mode = #tpu.pipeline_mode<synchronous>, transform_indices = @transform_1, window_bounds = array<i64: 1, 128>}, {pipeline_mode = #tpu.pipeline_mode<synchronous>, transform_indices = @transform_2, window_bounds = array<i64: 1, 128>}, {pipeline_mode = #tpu.pipeline_mode<synchronous>, transform_indices = @transform_3, window_bounds = array<i64: 128, 128>}, {pipeline_mode = #tpu.pipeline_mode<synchronous>, transform_indices = @transform_4, window_bounds = array<i64: 1, 128>}, {pipeline_mode = #tpu.pipeline_mode<synchronous>, transform_indices = @transform_5, window_bounds = array<i64: 9, 128, 128>}, {transform_indices = @transform_6, window_bounds = array<i64: 1, 256, 128>}]} {
    %c0 = arith.constant 0 : index
    %c0_0 = arith.constant 0 : index
    %c0_1 = arith.constant 0 : index
    %c0_2 = arith.constant 0 : index
    %0 = vector.load %arg1[%c0, %c0_0, %c0_1, %c0_2] : memref<1x18x24x128xbf16, #tpu.memory_space<vmem>>, vector<1x18x24x128xbf16>
    %1 = vector.shape_cast %0 : vector<1x18x24x128xbf16> to vector<18x24x128xbf16>
    %2 = vector.shape_cast %1 : vector<18x24x128xbf16> to vector<432x128xbf16>
    %3 = arith.extf %2 : vector<432x128xbf16> to vector<432x128xf32>
    %c0_3 = arith.constant 0 : index
    %c0_4 = arith.constant 0 : index
    %4 = vector.load %arg2[%c0_3, %c0_4] : memref<1x128xf32, #tpu.memory_space<vmem>>, vector<1x128xf32>
    %5 = vector.broadcast %4 : vector<1x128xf32> to vector<432x128xf32>
    %6 = arith.mulf %3, %5 : vector<432x128xf32>
    %c0_5 = arith.constant 0 : index
    %c0_6 = arith.constant 0 : index
    %7 = vector.load %arg3[%c0_5, %c0_6] : memref<1x128xf32, #tpu.memory_space<vmem>>, vector<1x128xf32>
    %8 = vector.broadcast %7 : vector<1x128xf32> to vector<432x128xf32>
    %9 = arith.addf %6, %8 : vector<432x128xf32>
    %cst = arith.constant 0.000000e+00 : f32
    %10 = vector.broadcast %cst : f32 to vector<432x128xf32>
    %11 = arith.maximumf %9, %10 : vector<432x128xf32>
    %12 = arith.truncf %11 : vector<432x128xf32> to vector<432x128xbf16>
    %c0_7 = arith.constant 0 : index
    %c0_8 = arith.constant 0 : index
    %13 = vector.load %arg4[%c0_7, %c0_8] : memref<128x128xbf16, #tpu.memory_space<vmem>>, vector<128x128xbf16>
    %cst_9 = arith.constant dense<0.000000e+00> : vector<432x128xf32>
    %14 = tpu.matmul %12, %13, %cst_9 {dimension_numbers = #tpu.dot_dimension_numbers<[1], [0], [0], [1], [0, 0, 1, 1], [], []>} : vector<432x128xbf16>, vector<128x128xbf16>, vector<432x128xf32> -> vector<432x128xf32>
    %c0_10 = arith.constant 0 : index
    %c0_11 = arith.constant 0 : index
    %15 = vector.load %arg5[%c0_10, %c0_11] : memref<1x128xf32, #tpu.memory_space<vmem>>, vector<1x128xf32>
    %16 = vector.broadcast %15 : vector<1x128xf32> to vector<432x128xf32>
    %17 = arith.addf %14, %16 : vector<432x128xf32>
    %cst_12 = arith.constant 0.000000e+00 : f32
    %18 = vector.broadcast %cst_12 : f32 to vector<432x128xf32>
    %19 = arith.maximumf %17, %18 : vector<432x128xf32>
    %20 = vector.shape_cast %19 : vector<432x128xf32> to vector<18x24x128xf32>
    %21 = tpu.iota {dimensions = array<i32: 0>} : vector<18x24x1xi32>
    %22 = tpu.iota {dimensions = array<i32: 1>} : vector<18x24x1xi32>
    %c0_i32 = arith.constant 0 : i32
    %23 = vector.broadcast %c0_i32 : i32 to vector<18x24x1xi32>
    %24 = arith.cmpi ne, %21, %23 : vector<18x24x1xi32>
    %c17_i32 = arith.constant 17 : i32
    %25 = vector.broadcast %c17_i32 : i32 to vector<18x24x1xi32>
    %26 = arith.cmpi ne, %21, %25 : vector<18x24x1xi32>
    %27 = arith.andi %24, %26 : vector<18x24x1xi1>
    %c0_i32_13 = arith.constant 0 : i32
    %28 = vector.broadcast %c0_i32_13 : i32 to vector<18x24x1xi32>
    %29 = arith.cmpi ne, %22, %28 : vector<18x24x1xi32>
    %30 = arith.andi %27, %29 : vector<18x24x1xi1>
    %c16_i32 = arith.constant 16 : i32
    %31 = vector.broadcast %c16_i32 : i32 to vector<18x24x1xi32>
    %32 = arith.cmpi sle, %22, %31 : vector<18x24x1xi32>
    %33 = arith.andi %30, %32 : vector<18x24x1xi1>
    %34 = arith.extui %33 : vector<18x24x1xi1> to vector<18x24x1xi32>
    %35 = arith.sitofp %34 : vector<18x24x1xi32> to vector<18x24x1xf32>
    %36 = vector.broadcast %35 : vector<18x24x1xf32> to vector<18x24x128xf32>
    %37 = arith.mulf %20, %36 : vector<18x24x128xf32>
    %38 = arith.truncf %37 : vector<18x24x128xf32> to vector<18x24x128xbf16>
    %c23_i32 = arith.constant 23 : i32
    %39 = tpu.dynamic_rotate %37 by %c23_i32 dim 1 : vector<18x24x128xf32>, i32 -> vector<18x24x128xf32>
    %40 = arith.truncf %39 : vector<18x24x128xf32> to vector<18x24x128xbf16>
    %c22_i32 = arith.constant 22 : i32
    %41 = tpu.dynamic_rotate %37 by %c22_i32 dim 1 : vector<18x24x128xf32>, i32 -> vector<18x24x128xf32>
    %42 = arith.truncf %41 : vector<18x24x128xf32> to vector<18x24x128xbf16>
    %43 = vector.extract_strided_slice %38 {offsets = [0, 0, 0], sizes = [16, 16, 128], strides = [1, 1, 1]} : vector<18x24x128xbf16> to vector<16x16x128xbf16>
    %44 = vector.shape_cast %43 : vector<16x16x128xbf16> to vector<256x128xbf16>
    %c0_14 = arith.constant 0 : index
    %c0_15 = arith.constant 0 : index
    %c0_16 = arith.constant 0 : index
    %45 = vector.load %arg6[%c0_14, %c0_15, %c0_16] : memref<9x128x128xbf16, #tpu.memory_space<vmem>>, vector<1x128x128xbf16>
    %46 = vector.shape_cast %45 : vector<1x128x128xbf16> to vector<128x128xbf16>
    %cst_17 = arith.constant dense<0.000000e+00> : vector<256x128xf32>
    %47 = tpu.matmul %44, %46, %cst_17 {dimension_numbers = #tpu.dot_dimension_numbers<[1], [0], [0], [1], [0, 0, 1, 1], [], []>} : vector<256x128xbf16>, vector<128x128xbf16>, vector<256x128xf32> -> vector<256x128xf32>
    %48 = vector.extract_strided_slice %40 {offsets = [0, 0, 0], sizes = [16, 16, 128], strides = [1, 1, 1]} : vector<18x24x128xbf16> to vector<16x16x128xbf16>
    %49 = vector.shape_cast %48 : vector<16x16x128xbf16> to vector<256x128xbf16>
    %c1 = arith.constant 1 : index
    %c0_18 = arith.constant 0 : index
    %c0_19 = arith.constant 0 : index
    %50 = vector.load %arg6[%c1, %c0_18, %c0_19] : memref<9x128x128xbf16, #tpu.memory_space<vmem>>, vector<1x128x128xbf16>
    %51 = vector.shape_cast %50 : vector<1x128x128xbf16> to vector<128x128xbf16>
    %cst_20 = arith.constant dense<0.000000e+00> : vector<256x128xf32>
    %52 = tpu.matmul %49, %51, %cst_20 {dimension_numbers = #tpu.dot_dimension_numbers<[1], [0], [0], [1], [0, 0, 1, 1], [], []>} : vector<256x128xbf16>, vector<128x128xbf16>, vector<256x128xf32> -> vector<256x128xf32>
    %53 = arith.addf %47, %52 : vector<256x128xf32>
    %54 = vector.extract_strided_slice %42 {offsets = [0, 0, 0], sizes = [16, 16, 128], strides = [1, 1, 1]} : vector<18x24x128xbf16> to vector<16x16x128xbf16>
    %55 = vector.shape_cast %54 : vector<16x16x128xbf16> to vector<256x128xbf16>
    %c2 = arith.constant 2 : index
    %c0_21 = arith.constant 0 : index
    %c0_22 = arith.constant 0 : index
    %56 = vector.load %arg6[%c2, %c0_21, %c0_22] : memref<9x128x128xbf16, #tpu.memory_space<vmem>>, vector<1x128x128xbf16>
    %57 = vector.shape_cast %56 : vector<1x128x128xbf16> to vector<128x128xbf16>
    %cst_23 = arith.constant dense<0.000000e+00> : vector<256x128xf32>
    %58 = tpu.matmul %55, %57, %cst_23 {dimension_numbers = #tpu.dot_dimension_numbers<[1], [0], [0], [1], [0, 0, 1, 1], [], []>} : vector<256x128xbf16>, vector<128x128xbf16>, vector<256x128xf32> -> vector<256x128xf32>
    %59 = arith.addf %53, %58 : vector<256x128xf32>
    %60 = vector.extract_strided_slice %38 {offsets = [1, 0, 0], sizes = [16, 16, 128], strides = [1, 1, 1]} : vector<18x24x128xbf16> to vector<16x16x128xbf16>
    %61 = vector.shape_cast %60 : vector<16x16x128xbf16> to vector<256x128xbf16>
    %c3 = arith.constant 3 : index
    %c0_24 = arith.constant 0 : index
    %c0_25 = arith.constant 0 : index
    %62 = vector.load %arg6[%c3, %c0_24, %c0_25] : memref<9x128x128xbf16, #tpu.memory_space<vmem>>, vector<1x128x128xbf16>
    %63 = vector.shape_cast %62 : vector<1x128x128xbf16> to vector<128x128xbf16>
    %cst_26 = arith.constant dense<0.000000e+00> : vector<256x128xf32>
    %64 = tpu.matmul %61, %63, %cst_26 {dimension_numbers = #tpu.dot_dimension_numbers<[1], [0], [0], [1], [0, 0, 1, 1], [], []>} : vector<256x128xbf16>, vector<128x128xbf16>, vector<256x128xf32> -> vector<256x128xf32>
    %65 = arith.addf %59, %64 : vector<256x128xf32>
    %66 = vector.extract_strided_slice %40 {offsets = [1, 0, 0], sizes = [16, 16, 128], strides = [1, 1, 1]} : vector<18x24x128xbf16> to vector<16x16x128xbf16>
    %67 = vector.shape_cast %66 : vector<16x16x128xbf16> to vector<256x128xbf16>
    %c4 = arith.constant 4 : index
    %c0_27 = arith.constant 0 : index
    %c0_28 = arith.constant 0 : index
    %68 = vector.load %arg6[%c4, %c0_27, %c0_28] : memref<9x128x128xbf16, #tpu.memory_space<vmem>>, vector<1x128x128xbf16>
    %69 = vector.shape_cast %68 : vector<1x128x128xbf16> to vector<128x128xbf16>
    %cst_29 = arith.constant dense<0.000000e+00> : vector<256x128xf32>
    %70 = tpu.matmul %67, %69, %cst_29 {dimension_numbers = #tpu.dot_dimension_numbers<[1], [0], [0], [1], [0, 0, 1, 1], [], []>} : vector<256x128xbf16>, vector<128x128xbf16>, vector<256x128xf32> -> vector<256x128xf32>
    %71 = arith.addf %65, %70 : vector<256x128xf32>
    %72 = vector.extract_strided_slice %42 {offsets = [1, 0, 0], sizes = [16, 16, 128], strides = [1, 1, 1]} : vector<18x24x128xbf16> to vector<16x16x128xbf16>
    %73 = vector.shape_cast %72 : vector<16x16x128xbf16> to vector<256x128xbf16>
    %c5 = arith.constant 5 : index
    %c0_30 = arith.constant 0 : index
    %c0_31 = arith.constant 0 : index
    %74 = vector.load %arg6[%c5, %c0_30, %c0_31] : memref<9x128x128xbf16, #tpu.memory_space<vmem>>, vector<1x128x128xbf16>
    %75 = vector.shape_cast %74 : vector<1x128x128xbf16> to vector<128x128xbf16>
    %cst_32 = arith.constant dense<0.000000e+00> : vector<256x128xf32>
    %76 = tpu.matmul %73, %75, %cst_32 {dimension_numbers = #tpu.dot_dimension_numbers<[1], [0], [0], [1], [0, 0, 1, 1], [], []>} : vector<256x128xbf16>, vector<128x128xbf16>, vector<256x128xf32> -> vector<256x128xf32>
    %77 = arith.addf %71, %76 : vector<256x128xf32>
    %78 = vector.extract_strided_slice %38 {offsets = [2, 0, 0], sizes = [16, 16, 128], strides = [1, 1, 1]} : vector<18x24x128xbf16> to vector<16x16x128xbf16>
    %79 = vector.shape_cast %78 : vector<16x16x128xbf16> to vector<256x128xbf16>
    %c6 = arith.constant 6 : index
    %c0_33 = arith.constant 0 : index
    %c0_34 = arith.constant 0 : index
    %80 = vector.load %arg6[%c6, %c0_33, %c0_34] : memref<9x128x128xbf16, #tpu.memory_space<vmem>>, vector<1x128x128xbf16>
    %81 = vector.shape_cast %80 : vector<1x128x128xbf16> to vector<128x128xbf16>
    %cst_35 = arith.constant dense<0.000000e+00> : vector<256x128xf32>
    %82 = tpu.matmul %79, %81, %cst_35 {dimension_numbers = #tpu.dot_dimension_numbers<[1], [0], [0], [1], [0, 0, 1, 1], [], []>} : vector<256x128xbf16>, vector<128x128xbf16>, vector<256x128xf32> -> vector<256x128xf32>
    %83 = arith.addf %77, %82 : vector<256x128xf32>
    %84 = vector.extract_strided_slice %40 {offsets = [2, 0, 0], sizes = [16, 16, 128], strides = [1, 1, 1]} : vector<18x24x128xbf16> to vector<16x16x128xbf16>
    %85 = vector.shape_cast %84 : vector<16x16x128xbf16> to vector<256x128xbf16>
    %c7 = arith.constant 7 : index
    %c0_36 = arith.constant 0 : index
    %c0_37 = arith.constant 0 : index
    %86 = vector.load %arg6[%c7, %c0_36, %c0_37] : memref<9x128x128xbf16, #tpu.memory_space<vmem>>, vector<1x128x128xbf16>
    %87 = vector.shape_cast %86 : vector<1x128x128xbf16> to vector<128x128xbf16>
    %cst_38 = arith.constant dense<0.000000e+00> : vector<256x128xf32>
    %88 = tpu.matmul %85, %87, %cst_38 {dimension_numbers = #tpu.dot_dimension_numbers<[1], [0], [0], [1], [0, 0, 1, 1], [], []>} : vector<256x128xbf16>, vector<128x128xbf16>, vector<256x128xf32> -> vector<256x128xf32>
    %89 = arith.addf %83, %88 : vector<256x128xf32>
    %90 = vector.extract_strided_slice %42 {offsets = [2, 0, 0], sizes = [16, 16, 128], strides = [1, 1, 1]} : vector<18x24x128xbf16> to vector<16x16x128xbf16>
    %91 = vector.shape_cast %90 : vector<16x16x128xbf16> to vector<256x128xbf16>
    %c8 = arith.constant 8 : index
    %c0_39 = arith.constant 0 : index
    %c0_40 = arith.constant 0 : index
    %92 = vector.load %arg6[%c8, %c0_39, %c0_40] : memref<9x128x128xbf16, #tpu.memory_space<vmem>>, vector<1x128x128xbf16>
    %93 = vector.shape_cast %92 : vector<1x128x128xbf16> to vector<128x128xbf16>
    %cst_41 = arith.constant dense<0.000000e+00> : vector<256x128xf32>
    %94 = tpu.matmul %91, %93, %cst_41 {dimension_numbers = #tpu.dot_dimension_numbers<[1], [0], [0], [1], [0, 0, 1, 1], [], []>} : vector<256x128xbf16>, vector<128x128xbf16>, vector<256x128xf32> -> vector<256x128xf32>
    %95 = arith.addf %89, %94 : vector<256x128xf32>
    %96 = arith.truncf %95 : vector<256x128xf32> to vector<256x128xbf16>
    %c0_42 = arith.constant 0 : index
    %c0_43 = arith.constant 0 : index
    %c0_44 = arith.constant 0 : index
    %97 = vector.load %arg7[%c0_42, %c0_43, %c0_44] : memref<1x256x128xbf16, #tpu.memory_space<vmem>>, vector<1x256x128xbf16>
    %98 = vector.shape_cast %97 : vector<1x256x128xbf16> to vector<256x128xbf16>
    %99 = vector.shape_cast %96 : vector<256x128xbf16> to vector<1x256x128xbf16>
    tpu.vector_store %arg7[%c0_42, %c0_43, %c0_44], %99 {strides = array<i32>} : memref<1x256x128xbf16, #tpu.memory_space<vmem>>, vector<1x256x128xbf16>,
    return
  }
  func.func @transform_0(%arg0: i32) -> (i32, i32, i32, i32) {
    %c0_i32 = arith.constant 0 : i32
    %c0_i32_0 = arith.constant 0 : i32
    %c0_i32_1 = arith.constant 0 : i32
    %c0_i32_2 = arith.constant 0 : i32
    return %arg0, %c0_i32, %c0_i32_0, %c0_i32_1 : i32, i32, i32, i32
  }
  func.func @transform_1(%arg0: i32) -> (i32, i32) {
    %c0_i32 = arith.constant 0 : i32
    %c0_i32_0 = arith.constant 0 : i32
    %c0_i32_1 = arith.constant 0 : i32
    return %c0_i32, %c0_i32_0 : i32, i32
  }
  func.func @transform_2(%arg0: i32) -> (i32, i32) {
    %c0_i32 = arith.constant 0 : i32
    %c0_i32_0 = arith.constant 0 : i32
    %c0_i32_1 = arith.constant 0 : i32
    return %c0_i32, %c0_i32_0 : i32, i32
  }
  func.func @transform_3(%arg0: i32) -> (i32, i32) {
    %c0_i32 = arith.constant 0 : i32
    %c0_i32_0 = arith.constant 0 : i32
    %c0_i32_1 = arith.constant 0 : i32
    return %c0_i32, %c0_i32_0 : i32, i32
  }
  func.func @transform_4(%arg0: i32) -> (i32, i32) {
    %c0_i32 = arith.constant 0 : i32
    %c0_i32_0 = arith.constant 0 : i32
    %c0_i32_1 = arith.constant 0 : i32
    return %c0_i32, %c0_i32_0 : i32, i32
  }
  func.func @transform_5(%arg0: i32) -> (i32, i32, i32) {
    %c0_i32 = arith.constant 0 : i32
    %c0_i32_0 = arith.constant 0 : i32
    %c0_i32_1 = arith.constant 0 : i32
    %c0_i32_2 = arith.constant 0 : i32
    return %c0_i32, %c0_i32_0, %c0_i32_1 : i32, i32, i32
  }
  func.func @transform_6(%arg0: i32) -> (i32, i32, i32) {
    %c0_i32 = arith.constant 0 : i32
    %c0_i32_0 = arith.constant 0 : i32
    %c0_i32_1 = arith.constant 0 : i32
    return %arg0, %c0_i32, %c0_i32_0 : i32, i32, i32
  }
}

</mosaic_0001>

<llo_original>
// kernel: _lambda_.1
$region0: #{_lambda_.1}
  #allocation0 [shape = 'u32[]', space=smem, size = 0x4, offset = 0x4, fixed_abs, tag = 'smem constant byte address 0x4 - core index']
  #allocation1 [shape = 'u32[72,128]{1,0:T(1,128)}', space=vmem, size = 0x9000, scoped, tag = 'internal scratch']
  %s0 = inlined_call_operand.vmem [shape: bf16[2,18,24,128], index: 0, kind: input, shape index: {}]
  %s1 = inlined_call_operand.vmem [shape: f32[1,128], index: 1, kind: input, shape index: {}]
  %s2 = inlined_call_operand.vmem [shape: f32[1,128], index: 2, kind: input, shape index: {}]
  %s3 = inlined_call_operand.vmem [shape: bf16[128,128], index: 3, kind: input, shape index: {}]
  %s4 = inlined_call_operand.vmem [shape: f32[1,128], index: 4, kind: input, shape index: {}]
  %s5 = inlined_call_operand.vmem [shape: bf16[9,128,128], index: 5, kind: input, shape index: {}]
  %s6 = inlined_call_operand.vmem [shape: bf16[2,256,128], index: 6, kind: output, shape index: {}]
  %s7 = sld [smem:[#allocation0]]
  $region57: #{_lambda_.1} parent=0
    _
  %s9 = ssub.s32 1, %s7
  %s10 = scalar_select 0, %s9, %s7
  loop: start=0, step=1, limit=4
  $region2: #{_lambda_.1} parent=0 // loop_pre_header
    _
  $region3: #{_lambda_.1} parent=0 // loop_header
    %s12 = sphi 0, %s16
    %p13 = scmp.ge.s32.totalorder %s12, 4
    %s22 = sphi 0, %s24
    %s25 = sphi 0, %s22
    %s26 = sphi 0, %s25
    %s42 = sphi 0, %s26
    %s46 = sphi 0, %s46
    %s48 = sphi 0, %s46
    %s49 = sphi 0, %s48
    %s63 = sphi 0, %s49
    %s67 = sphi 0, %s67
    %s69 = sphi 0, %s67
    %s70 = sphi 0, %s69
    %s84 = sphi 0, %s70
    %s88 = sphi 0, %s88
    %s90 = sphi 0, %s88
    %s91 = sphi 0, %s90
    %s105 = sphi 0, %s91
    %s109 = sphi 0, %s109
    %s111 = sphi 0, %s109
    %s112 = sphi 0, %s111
    %s126 = sphi 0, %s112
    %s130 = sphi 0, %s130
    %s132 = sphi 0, %s130
    %s133 = sphi 0, %s132
    %s147 = sphi 0, %s133
    %s153 = sphi 0, %s155
    %s156 = sphi 0, %s153
    %s157 = sphi 0, %s156
    %s173 = sphi 0, %s157
  $region4: #{_lambda_.1} parent=0 // loop_header_branch
    %15 = sbr.rel (%p13) target = $region8
  $region5: #{_lambda_.1} parent=0 // loop_body
    %s17 = ssub.s32 %s12, 1
    %s18 = ssub.s32 %s12, 2
    %s19 = sadd.s32 %s12, 1
    %s20 = ssub.s32 %s12, %s19
    %p21 = scmp.eq.s32.totalorder %s20, 0
    %s23 = sadd.s32 %s22, 1
    %s24 = scalar_select %p21, %s22, %s23
    %p27 = pneg %p21
    %p28 = scmp.eq.s32.totalorder %s12, 1
    %p29 = por %p27, %p28
    %p30 = scmp.ne.s32.totalorder %s22, %s25
    %p31 = scmp.eq.s32.totalorder %s12, 0
    %p32 = por %p30, %p31
    %p33 = scmp.ne.s32.totalorder %s22, %s25
    %p34 = scmp.eq.s32.totalorder %s17, 1
    %p35 = por %p33, %p34
    %p36 = scmp.ne.s32.totalorder %s25, %s26
    %p37 = scmp.eq.s32.totalorder %s17, 0
    %p38 = por %p36, %p37
    %p39 = scmp.ne.s32.totalorder %s25, %s26
    %p40 = scmp.eq.s32.totalorder %s18, 1
    %p41 = por %p39, %p40
    %p43 = scmp.ne.s32.totalorder %s26, %s42
    %p44 = scmp.eq.s32.totalorder %s18, 0
    %p45 = por %p43, %p44
    %s47 = sadd.s32 %s46, 1
    %p50 = scmp.eq.s32.totalorder %s12, 1
    %p51 = scmp.ne.s32.totalorder %s46, %s48
    %p52 = scmp.eq.s32.totalorder %s12, 0
    %p53 = por %p51, %p52
    %p54 = scmp.ne.s32.totalorder %s46, %s48
    %p55 = scmp.eq.s32.totalorder %s17, 1
    %p56 = por %p54, %p55
    %p57 = scmp.ne.s32.totalorder %s48, %s49
    %p58 = scmp.eq.s32.totalorder %s17, 0
    %p59 = por %p57, %p58
    %p60 = scmp.ne.s32.totalorder %s48, %s49
    %p61 = scmp.eq.s32.totalorder %s18, 1
    %p62 = por %p60, %p61
    %p64 = scmp.ne.s32.totalorder %s49, %s63
    %p65 = scmp.eq.s32.totalorder %s18, 0
    %p66 = por %p64, %p65
    %s68 = sadd.s32 %s67, 1
    %p71 = scmp.eq.s32.totalorder %s12, 1
    %p72 = scmp.ne.s32.totalorder %s67, %s69
    %p73 = scmp.eq.s32.totalorder %s12, 0
    %p74 = por %p72, %p73
    %p75 = scmp.ne.s32.totalorder %s67, %s69
    %p76 = scmp.eq.s32.totalorder %s17, 1
    %p77 = por %p75, %p76
    %p78 = scmp.ne.s32.totalorder %s69, %s70
    %p79 = scmp.eq.s32.totalorder %s17, 0
    %p80 = por %p78, %p79
    %p81 = scmp.ne.s32.totalorder %s69, %s70
    %p82 = scmp.eq.s32.totalorder %s18, 1
    %p83 = por %p81, %p82
    %p85 = scmp.ne.s32.totalorder %s70, %s84
    %p86 = scmp.eq.s32.totalorder %s18, 0
    %p87 = por %p85, %p86
    %s89 = sadd.s32 %s88, 1
    %p92 = scmp.eq.s32.totalorder %s12, 1
    %p93 = scmp.ne.s32.totalorder %s88, %s90
    %p94 = scmp.eq.s32.totalorder %s12, 0
    %p95 = por %p93, %p94
    %p96 = scmp.ne.s32.totalorder %s88, %s90
    %p97 = scmp.eq.s32.totalorder %s17, 1
    %p98 = por %p96, %p97
    %p99 = scmp.ne.s32.totalorder %s90, %s91
    %p100 = scmp.eq.s32.totalorder %s17, 0
    %p101 = por %p99, %p100
    %p102 = scmp.ne.s32.totalorder %s90, %s91
    %p103 = scmp.eq.s32.totalorder %s18, 1
    %p104 = por %p102, %p103
    %p106 = scmp.ne.s32.totalorder %s91, %s105
    %p107 = scmp.eq.s32.totalorder %s18, 0
    %p108 = por %p106, %p107
    %s110 = sadd.s32 %s109, 1
    %p113 = scmp.eq.s32.totalorder %s12, 1
    %p114 = scmp.ne.s32.totalorder %s109, %s111
    %p115 = scmp.eq.s32.totalorder %s12, 0
    %p116 = por %p114, %p115
    %p117 = scmp.ne.s32.totalorder %s109, %s111
    %p118 = scmp.eq.s32.totalorder %s17, 1
    %p119 = por %p117, %p118
    %p120 = scmp.ne.s32.totalorder %s111, %s112
    %p121 = scmp.eq.s32.totalorder %s17, 0
    %p122 = por %p120, %p121
    %p123 = scmp.ne.s32.totalorder %s111, %s112
    %p124 = scmp.eq.s32.totalorder %s18, 1
    %p125 = por %p123, %p124
    %p127 = scmp.ne.s32.totalorder %s112, %s126
    %p128 = scmp.eq.s32.totalorder %s18, 0
    %p129 = por %p127, %p128
    %s131 = sadd.s32 %s130, 1
    %p134 = scmp.eq.s32.totalorder %s12, 1
    %p135 = scmp.ne.s32.totalorder %s130, %s132
    %p136 = scmp.eq.s32.totalorder %s12, 0
    %p137 = por %p135, %p136
    %p138 = scmp.ne.s32.totalorder %s130, %s132
    %p139 = scmp.eq.s32.totalorder %s17, 1
    %p140 = por %p138, %p139
    %p141 = scmp.ne.s32.totalorder %s132, %s133
    %p142 = scmp.eq.s32.totalorder %s17, 0
    %p143 = por %p141, %p142
    %p144 = scmp.ne.s32.totalorder %s132, %s133
    %p145 = scmp.eq.s32.totalorder %s18, 1
    %p146 = por %p144, %p145
    %p148 = scmp.ne.s32.totalorder %s133, %s147
    %p149 = scmp.eq.s32.totalorder %s18, 0
    %p150 = por %p148, %p149
    %s151 = ssub.s32 %s12, %s19
    %p152 = scmp.eq.s32.totalorder %s151, 0
    %s154 = sadd.s32 %s153, 1
    %s155 = scalar_select %p152, %s153, %s154
    %p158 = pneg %p152
    %p159 = scmp.eq.s32.totalorder %s12, 1
    %p160 = por %p158, %p159
    %p161 = scmp.ne.s32.totalorder %s153, %s156
    %p162 = scmp.eq.s32.totalorder %s12, 0
    %p163 = por %p161, %p162
    %p164 = scmp.ne.s32.totalorder %s153, %s156
    %p165 = scmp.eq.s32.totalorder %s17, 1
    %p166 = por %p164, %p165
    %p167 = scmp.ne.s32.totalorder %s156, %s157
    %p168 = scmp.eq.s32.totalorder %s17, 0
    %p169 = por %p167, %p168
    %p170 = scmp.ne.s32.totalorder %s156, %s157
    %p171 = scmp.eq.s32.totalorder %s18, 1
    %p172 = por %p170, %p171
    %p174 = scmp.ne.s32.totalorder %s157, %s173
    %p175 = scmp.eq.s32.totalorder %s18, 0
    %p176 = por %p174, %p175
    %p177 = scmp.le.s32.totalorder 1, %s12
    %p178 = scmp.lt.s32.totalorder %s12, 3
    %p179 = pnand %p177, %p178
    %p180 = pneg %p179
    // Predicated region
    $region9: #{_lambda_.1} parent=5 // pred_check
      _
    $region10: #{_lambda_.1} parent=5 // pred_check_branch
      %182 = sbr.rel (%p179) target = $region12
    $region11: #{_lambda_.1} parent=5 // pred_region
      %s183 = ssub.s32 %s12, 1
      // Predicated region
      $region13: #{_lambda_.1} parent=11 // pred_check
        %p184 = pneg %p59
      $region14: #{_lambda_.1} parent=11 // pred_check_branch
        %186 = sbr.rel (%p184) target = $region16
      $region15: #{_lambda_.1} parent=11 // pred_region
        _
      $region16: #{_lambda_.1} parent=11 // pred_fallthru
        _
      // Predicated region
      $region17: #{_lambda_.1} parent=11 // pred_check
        %p187 = pneg %p80
      $region18: #{_lambda_.1} parent=11 // pred_check_branch
        %189 = sbr.rel (%p187) target = $region20
      $region19: #{_lambda_.1} parent=11 // pred_region
        _
      $region20: #{_lambda_.1} parent=11 // pred_fallthru
        _
      // Predicated region
      $region21: #{_lambda_.1} parent=11 // pred_check
        %p190 = pneg %p101
      $region22: #{_lambda_.1} parent=11 // pred_check_branch
        %192 = sbr.rel (%p190) target = $region24
      $region23: #{_lambda_.1} parent=11 // pred_region
        _
      $region24: #{_lambda_.1} parent=11 // pred_fallthru
        _
      // Predicated region
      $region25: #{_lambda_.1} parent=11 // pred_check
        %p193 = pneg %p122
      $region26: #{_lambda_.1} parent=11 // pred_check_branch
        %195 = sbr.rel (%p193) target = $region28
      $region27: #{_lambda_.1} parent=11 // pred_region
        _
      $region28: #{_lambda_.1} parent=11 // pred_fallthru
        _
      // Predicated region
      $region29: #{_lambda_.1} parent=11 // pred_check
        %p196 = pneg %p143
      $region30: #{_lambda_.1} parent=11 // pred_check_branch
        %198 = sbr.rel (%p196) target = $region32
      $region31: #{_lambda_.1} parent=11 // pred_region
        _
      $region32: #{_lambda_.1} parent=11 // pred_fallthru
        _
    $region12: #{_lambda_.1} parent=5 // pred_fallthru
      _
    %p199 = scmp.lt.s32.totalorder %s12, 2
    // Predicated region
    $region33: #{_lambda_.1} parent=5 // pred_check
      %p200 = pneg %p199
    $region34: #{_lambda_.1} parent=5 // pred_check_branch
      %202 = sbr.rel (%p200) target = $region36
    $region35: #{_lambda_.1} parent=5 // pred_region
      // Predicated region
      $region37: #{_lambda_.1} parent=35 // pred_check
        %p203 = pneg %p32
      $region38: #{_lambda_.1} parent=35 // pred_check_branch
        %205 = sbr.rel (%p203) target = $region40
      $region39: #{_lambda_.1} parent=35 // pred_region
        %p206 = scmp.lt.s32.totalorder %s12, 1
        %s207 = scalar_select %p206, %s12, 1
        %s208 = smul.addr %s207, 54
        %s209 = smul.addr %s208, 4
        %s210 = scalar_lea.vmem %s0, %s209
      $region40: #{_lambda_.1} parent=35 // pred_fallthru
        _
    $region36: #{_lambda_.1} parent=5 // pred_fallthru
      _
    %p211 = scmp.le.s32.totalorder 1, %s12
    %p212 = scmp.lt.s32.totalorder %s12, 3
    %p213 = pnand %p211, %p212
    %p214 = pneg %p213
    // Predicated region
    $region41: #{_lambda_.1} parent=5 // pred_check
      _
    $region42: #{_lambda_.1} parent=5 // pred_check_branch
      %216 = sbr.rel (%p213) target = $region44
    $region43: #{_lambda_.1} parent=5 // pred_region
      %s217 = ssub.s32 %s12, 1
      %p218 = scmp.lt.s32.totalorder %s17, 1
      %s219 = scalar_select %p218, %s17, 1
      %s220 = smul.addr %s219, 54
      %s221 = smul.addr %s220, 4
      %s222 = scalar_lea.vmem %s0, %s221
      %p223 = pneg %p38
      %p224 = pneg %p35
      %p225 = pneg %p59
      %p226 = pneg %p56
      %p227 = pneg %p80
      %p228 = pneg %p77
      %p229 = pneg %p101
      %p230 = pneg %p98
      %p231 = pneg %p122
      %p232 = pneg %p119
      %p233 = pneg %p143
      %p234 = pneg %p140
      %p235 = pneg %p169
      %p236 = pneg %p166
      %p237 = scmp.lt.s32.totalorder %s17, 1
      %s238 = scalar_select %p237, %s17, 1
      %s239 = smul.addr %s238, 32
      %s240 = smul.addr %s239, 4
      %s241 = scalar_lea.vmem %s6, %s240
      %p242 = scmp.lt.s32.totalorder %s17, 1
      %s243 = scalar_select %p242, %s17, 1
      %s244 = smul.addr %s243, 54
      %s245 = smul.addr %s244, 4
      %s246 = scalar_lea.vmem %s0, %s245
      %p247 = scmp.lt.s32.totalorder %s17, 1
      %s248 = scalar_select %p247, %s17, 1
      %s249 = smul.addr %s248, 32
      %s250 = smul.addr %s249, 4
      %s251 = scalar_lea.vmem %s6, %s250
      %v252 = vld [vmem:[%s246] sm:$0xf]
      %v253 = vld [vmem:[%s246 + $0x4] sm:$0xf]
      %v254 = vld [vmem:[%s246 + $0x8] sm:$0xf]
      %v255 = vld [vmem:[%s246 + $0xc] sm:$0xf]
      %v256 = vld [vmem:[%s246 + $0x10] sm:$0xf]
      %v257 = vld [vmem:[%s246 + $0x14] sm:$0xf]
      %v258 = vld [vmem:[%s246 + $0x18] sm:$0xf]
      %v259 = vld [vmem:[%s246 + $0x1c] sm:$0xf]
      %v260 = vld [vmem:[%s246 + $0x20] sm:$0xf]
      %v261 = vld [vmem:[%s246 + $0x24] sm:$0xf]
      %v262 = vld [vmem:[%s246 + $0x28] sm:$0xf]
      %v263 = vld [vmem:[%s246 + $0x2c] sm:$0xf]
      %v264 = vld [vmem:[%s246 + $0x30] sm:$0xf]
      %v265 = vld [vmem:[%s246 + $0x34] sm:$0xf]
      %v266 = vld [vmem:[%s246 + $0x38] sm:$0xf]
      %v267 = vld [vmem:[%s246 + $0x3c] sm:$0xf]
      %v268 = vld [vmem:[%s246 + $0x40] sm:$0xf]
      %v269 = vld [vmem:[%s246 + $0x44] sm:$0xf]
      %v270 = vld [vmem:[%s246 + $0x48] sm:$0xf]
      %v271 = vld [vmem:[%s246 + $0x4c] sm:$0xf]
      %v272 = vld [vmem:[%s246 + $0x50] sm:$0xf]
      %v273 = vld [vmem:[%s246 + $0x54] sm:$0xf]
      %v274 = vld [vmem:[%s246 + $0x58] sm:$0xf]
      %v275 = vld [vmem:[%s246 + $0x5c] sm:$0xf]
      %v276 = vld [vmem:[%s246 + $0x60] sm:$0xf]
      %v277 = vld [vmem:[%s246 + $0x64] sm:$0xf]
      %v278 = vld [vmem:[%s246 + $0x68] sm:$0xf]
      %v279 = vld [vmem:[%s246 + $0x6c] sm:$0xf]
      %v280 = vld [vmem:[%s246 + $0x70] sm:$0xf]
      %v281 = vld [vmem:[%s246 + $0x74] sm:$0xf]
      %v282 = vld [vmem:[%s246 + $0x78] sm:$0xf]
      %v283 = vld [vmem:[%s246 + $0x7c] sm:$0xf]
      %v284 = vld [vmem:[%s246 + $0x80] sm:$0xf]
      %v285 = vld [vmem:[%s246 + $0x84] sm:$0xf]
      %v286 = vld [vmem:[%s246 + $0x88] sm:$0xf]
      %v287 = vld [vmem:[%s246 + $0x8c] sm:$0xf]
      %v288 = vld [vmem:[%s246 + $0x90] sm:$0xf]
      %v289 = vld [vmem:[%s246 + $0x94] sm:$0xf]
      %v290 = vld [vmem:[%s246 + $0x98] sm:$0xf]
      %v291 = vld [vmem:[%s246 + $0x9c] sm:$0xf]
      %v292 = vld [vmem:[%s246 + $0xa0] sm:$0xf]
      %v293 = vld [vmem:[%s246 + $0xa4] sm:$0xf]
      %v294 = vld [vmem:[%s246 + $0xa8] sm:$0xf]
      %v295 = vld [vmem:[%s246 + $0xac] sm:$0xf]
      %v296 = vld [vmem:[%s246 + $0xb0] sm:$0xf]
      %v297 = vld [vmem:[%s246 + $0xb4] sm:$0xf]
      %v298 = vld [vmem:[%s246 + $0xb8] sm:$0xf]
      %v299 = vld [vmem:[%s246 + $0xbc] sm:$0xf]
      %v300 = vld [vmem:[%s246 + $0xc0] sm:$0xf]
      %v301 = vld [vmem:[%s246 + $0xc4] sm:$0xf]
      %v302 = vld [vmem:[%s246 + $0xc8] sm:$0xf]
      %v303 = vld [vmem:[%s246 + $0xcc] sm:$0xf]
      %v304 = vld [vmem:[%s246 + $0xd0] sm:$0xf]
      %v305 = vld [vmem:[%s246 + $0xd4] sm:$0xf]
      %v306 = vunpack.c.l.bf16 %v252
      %v307 = vunpack.c.l.bf16 %v253
      %v308 = vunpack.c.l.bf16 %v254
      %v309 = vunpack.c.l.bf16 %v255
      %v310 = vunpack.c.l.bf16 %v256
      %v311 = vunpack.c.l.bf16 %v257
      %v312 = vunpack.c.l.bf16 %v258
      %v313 = vunpack.c.l.bf16 %v259
      %v314 = vunpack.c.l.bf16 %v260
      %v315 = vunpack.c.l.bf16 %v261
      %v316 = vunpack.c.l.bf16 %v262
      %v317 = vunpack.c.l.bf16 %v263
      %v318 = vunpack.c.l.bf16 %v264
      %v319 = vunpack.c.l.bf16 %v265
      %v320 = vunpack.c.l.bf16 %v266
      %v321 = vunpack.c.l.bf16 %v267
      %v322 = vunpack.c.l.bf16 %v268
      %v323 = vunpack.c.l.bf16 %v269
      %v324 = vunpack.c.l.bf16 %v270
      %v325 = vunpack.c.l.bf16 %v271
      %v326 = vunpack.c.l.bf16 %v272
      %v327 = vunpack.c.l.bf16 %v273
      %v328 = vunpack.c.l.bf16 %v274
      %v329 = vunpack.c.l.bf16 %v275
      %v330 = vunpack.c.l.bf16 %v276
      %v331 = vunpack.c.l.bf16 %v277
      %v332 = vunpack.c.l.bf16 %v278
      %v333 = vunpack.c.l.bf16 %v279
      %v334 = vunpack.c.l.bf16 %v280
      %v335 = vunpack.c.l.bf16 %v281
      %v336 = vunpack.c.l.bf16 %v282
      %v337 = vunpack.c.l.bf16 %v283
      %v338 = vunpack.c.l.bf16 %v284
      %v339 = vunpack.c.l.bf16 %v285
      %v340 = vunpack.c.l.bf16 %v286
      %v341 = vunpack.c.l.bf16 %v287
      %v342 = vunpack.c.l.bf16 %v288
      %v343 = vunpack.c.l.bf16 %v289
      %v344 = vunpack.c.l.bf16 %v290
      %v345 = vunpack.c.l.bf16 %v291
      %v346 = vunpack.c.l.bf16 %v292
      %v347 = vunpack.c.l.bf16 %v293
      %v348 = vunpack.c.l.bf16 %v294
      %v349 = vunpack.c.l.bf16 %v295
      %v350 = vunpack.c.l.bf16 %v296
      %v351 = vunpack.c.l.bf16 %v297
      %v352 = vunpack.c.l.bf16 %v298
      %v353 = vunpack.c.l.bf16 %v299
      %v354 = vunpack.c.l.bf16 %v300
      %v355 = vunpack.c.l.bf16 %v301
      %v356 = vunpack.c.l.bf16 %v302
      %v357 = vunpack.c.l.bf16 %v303
      %v358 = vunpack.c.l.bf16 %v304
      %v359 = vunpack.c.l.bf16 %v305
      %v360 = vld [vmem:[%s1] sm:$0x1]
      %v362 = vperm.slane %v360, 0
      %v364 = vmul.f32 %v306, %v362
      %v365 = vmul.f32 %v307, %v362
      %v366 = vmul.f32 %v308, %v362
      %v367 = vmul.f32 %v309, %v362
      %v368 = vmul.f32 %v310, %v362
      %v369 = vmul.f32 %v311, %v362
      %v370 = vmul.f32 %v312, %v362
      %v371 = vmul.f32 %v313, %v362
      %v372 = vmul.f32 %v314, %v362
      %v373 = vmul.f32 %v315, %v362
      %v374 = vmul.f32 %v316, %v362
      %v375 = vmul.f32 %v317, %v362
      %v376 = vmul.f32 %v318, %v362
      %v377 = vmul.f32 %v319, %v362
      %v378 = vmul.f32 %v320, %v362
      %v379 = vmul.f32 %v321, %v362
      %v380 = vmul.f32 %v322, %v362
      %v381 = vmul.f32 %v323, %v362
      %v382 = vmul.f32 %v324, %v362
      %v383 = vmul.f32 %v325, %v362
      %v384 = vmul.f32 %v326, %v362
      %v385 = vmul.f32 %v327, %v362
      %v386 = vmul.f32 %v328, %v362
      %v387 = vmul.f32 %v329, %v362
      %v388 = vmul.f32 %v330, %v362
      %v389 = vmul.f32 %v331, %v362
      %v390 = vmul.f32 %v332, %v362
      %v391 = vmul.f32 %v333, %v362
      %v392 = vmul.f32 %v334, %v362
      %v393 = vmul.f32 %v335, %v362
      %v394 = vmul.f32 %v336, %v362
      %v395 = vmul.f32 %v337, %v362
      %v396 = vmul.f32 %v338, %v362
      %v397 = vmul.f32 %v339, %v362
      %v398 = vmul.f32 %v340, %v362
      %v399 = vmul.f32 %v341, %v362
      %v400 = vmul.f32 %v342, %v362
      %v401 = vmul.f32 %v343, %v362
      %v402 = vmul.f32 %v344, %v362
      %v403 = vmul.f32 %v345, %v362
      %v404 = vmul.f32 %v346, %v362
      %v405 = vmul.f32 %v347, %v362
      %v406 = vmul.f32 %v348, %v362
      %v407 = vmul.f32 %v349, %v362
      %v408 = vmul.f32 %v350, %v362
      %v409 = vmul.f32 %v351, %v362
      %v410 = vmul.f32 %v352, %v362
      %v411 = vmul.f32 %v353, %v362
      %v412 = vmul.f32 %v354, %v362
      %v413 = vmul.f32 %v355, %v362
      %v414 = vmul.f32 %v356, %v362
      %v415 = vmul.f32 %v357, %v362
      %v416 = vmul.f32 %v358, %v362
      %v417 = vmul.f32 %v359, %v362
      %v418 = vld [vmem:[%s2] sm:$0x1]
      %v420 = vperm.slane %v418, 0
      %v422 = vadd.f32 %v364, %v420
      %v423 = vadd.f32 %v365, %v420
      %v424 = vadd.f32 %v366, %v420
      %v425 = vadd.f32 %v367, %v420
      %v426 = vadd.f32 %v368, %v420
      %v427 = vadd.f32 %v369, %v420
      %v428 = vadd.f32 %v370, %v420
      %v429 = vadd.f32 %v371, %v420
      %v430 = vadd.f32 %v372, %v420
      %v431 = vadd.f32 %v373, %v420
      %v432 = vadd.f32 %v374, %v420
      %v433 = vadd.f32 %v375, %v420
      %v434 = vadd.f32 %v376, %v420
      %v435 = vadd.f32 %v377, %v420
      %v436 = vadd.f32 %v378, %v420
      %v437 = vadd.f32 %v379, %v420
      %v438 = vadd.f32 %v380, %v420
      %v439 = vadd.f32 %v381, %v420
      %v440 = vadd.f32 %v382, %v420
      %v441 = vadd.f32 %v383, %v420
      %v442 = vadd.f32 %v384, %v420
      %v443 = vadd.f32 %v385, %v420
      %v444 = vadd.f32 %v386, %v420
      %v445 = vadd.f32 %v387, %v420
      %v446 = vadd.f32 %v388, %v420
      %v447 = vadd.f32 %v389, %v420
      %v448 = vadd.f32 %v390, %v420
      %v449 = vadd.f32 %v391, %v420
      %v450 = vadd.f32 %v392, %v420
      %v451 = vadd.f32 %v393, %v420
      %v452 = vadd.f32 %v394, %v420
      %v453 = vadd.f32 %v395, %v420
      %v454 = vadd.f32 %v396, %v420
      %v455 = vadd.f32 %v397, %v420
      %v456 = vadd.f32 %v398, %v420
      %v457 = vadd.f32 %v399, %v420
      %v458 = vadd.f32 %v400, %v420
      %v459 = vadd.f32 %v401, %v420
      %v460 = vadd.f32 %v402, %v420
      %v461 = vadd.f32 %v403, %v420
      %v462 = vadd.f32 %v404, %v420
      %v463 = vadd.f32 %v405, %v420
      %v464 = vadd.f32 %v406, %v420
      %v465 = vadd.f32 %v407, %v420
      %v466 = vadd.f32 %v408, %v420
      %v467 = vadd.f32 %v409, %v420
      %v468 = vadd.f32 %v410, %v420
      %v469 = vadd.f32 %v411, %v420
      %v470 = vadd.f32 %v412, %v420
      %v471 = vadd.f32 %v413, %v420
      %v472 = vadd.f32 %v414, %v420
      %v473 = vadd.f32 %v415, %v420
      %v474 = vadd.f32 %v416, %v420
      %v475 = vadd.f32 %v417, %v420
      %v476 = vmax.f32 %v422, 0.0
      %v477 = vmax.f32 %v423, 0.0
      %v478 = vmax.f32 %v424, 0.0
      %v479 = vmax.f32 %v425, 0.0
      %v480 = vmax.f32 %v426, 0.0
      %v481 = vmax.f32 %v427, 0.0
      %v482 = vmax.f32 %v428, 0.0
      %v483 = vmax.f32 %v429, 0.0
      %v484 = vmax.f32 %v430, 0.0
      %v485 = vmax.f32 %v431, 0.0
      %v486 = vmax.f32 %v432, 0.0
      %v487 = vmax.f32 %v433, 0.0
      %v488 = vmax.f32 %v434, 0.0
      %v489 = vmax.f32 %v435, 0.0
      %v490 = vmax.f32 %v436, 0.0
      %v491 = vmax.f32 %v437, 0.0
      %v492 = vmax.f32 %v438, 0.0
      %v493 = vmax.f32 %v439, 0.0
      %v494 = vmax.f32 %v440, 0.0
      %v495 = vmax.f32 %v441, 0.0
      %v496 = vmax.f32 %v442, 0.0
      %v497 = vmax.f32 %v443, 0.0
      %v498 = vmax.f32 %v444, 0.0
      %v499 = vmax.f32 %v445, 0.0
      %v500 = vmax.f32 %v446, 0.0
      %v501 = vmax.f32 %v447, 0.0
      %v502 = vmax.f32 %v448, 0.0
      %v503 = vmax.f32 %v449, 0.0
      %v504 = vmax.f32 %v450, 0.0
      %v505 = vmax.f32 %v451, 0.0
      %v506 = vmax.f32 %v452, 0.0
      %v507 = vmax.f32 %v453, 0.0
      %v508 = vmax.f32 %v454, 0.0
      %v509 = vmax.f32 %v455, 0.0
      %v510 = vmax.f32 %v456, 0.0
      %v511 = vmax.f32 %v457, 0.0
      %v512 = vmax.f32 %v458, 0.0
      %v513 = vmax.f32 %v459, 0.0
      %v514 = vmax.f32 %v460, 0.0
      %v515 = vmax.f32 %v461, 0.0
      %v516 = vmax.f32 %v462, 0.0
      %v517 = vmax.f32 %v463, 0.0
      %v518 = vmax.f32 %v464, 0.0
      %v519 = vmax.f32 %v465, 0.0
      %v520 = vmax.f32 %v466, 0.0
      %v521 = vmax.f32 %v467, 0.0
      %v522 = vmax.f32 %v468, 0.0
      %v523 = vmax.f32 %v469, 0.0
      %v524 = vmax.f32 %v470, 0.0
      %v525 = vmax.f32 %v471, 0.0
      %v526 = vmax.f32 %v472, 0.0
      %v527 = vmax.f32 %v473, 0.0
      %v528 = vmax.f32 %v474, 0.0
      %v529 = vmax.f32 %v475, 0.0
      %v530 = vpack.c.bf16 %v477, %v476
      %v531 = vpack.c.bf16 %v479, %v478
      %v532 = vpack.c.bf16 %v481, %v480
      %v533 = vpack.c.bf16 %v483, %v482
      %v534 = vpack.c.bf16 %v485, %v484
      %v535 = vpack.c.bf16 %v487, %v486
      %v536 = vpack.c.bf16 %v489, %v488
      %v537 = vpack.c.bf16 %v491, %v490
      %v538 = vpack.c.bf16 %v493, %v492
      %v539 = vpack.c.bf16 %v495, %v494
      %v540 = vpack.c.bf16 %v497, %v496
      %v541 = vpack.c.bf16 %v499, %v498
      %v542 = vpack.c.bf16 %v501, %v500
      %v543 = vpack.c.bf16 %v503, %v502
      %v544 = vpack.c.bf16 %v505, %v504
      %v545 = vpack.c.bf16 %v507, %v506
      %v546 = vpack.c.bf16 %v509, %v508
      %v547 = vpack.c.bf16 %v511, %v510
      %v548 = vpack.c.bf16 %v513, %v512
      %v549 = vpack.c.bf16 %v515, %v514
      %v550 = vpack.c.bf16 %v517, %v516
      %v551 = vpack.c.bf16 %v519, %v518
      %v552 = vpack.c.bf16 %v521, %v520
      %v553 = vpack.c.bf16 %v523, %v522
      %v554 = vpack.c.bf16 %v525, %v524
      %v555 = vpack.c.bf16 %v527, %v526
      %v556 = vpack.c.bf16 %v529, %v528
      %v557 = vld [vmem:[%s3] sm:$0xf]
      %v558 = vld [vmem:[%s3 + $0x4] sm:$0xf]
      %v559 = vld [vmem:[%s3 + $0x8] sm:$0xf]
      %v560 = vld [vmem:[%s3 + $0xc] sm:$0xf]
      %v561 = vld [vmem:[%s3 + $0x10] sm:$0xf]
      %v562 = vld [vmem:[%s3 + $0x14] sm:$0xf]
      %v563 = vld [vmem:[%s3 + $0x18] sm:$0xf]
      %v564 = vld [vmem:[%s3 + $0x1c] sm:$0xf]
      %v565 = vld [vmem:[%s3 + $0x20] sm:$0xf]
      %v566 = vld [vmem:[%s3 + $0x24] sm:$0xf]
      %v567 = vld [vmem:[%s3 + $0x28] sm:$0xf]
      %v568 = vld [vmem:[%s3 + $0x2c] sm:$0xf]
      %v569 = vld [vmem:[%s3 + $0x30] sm:$0xf]
      %v570 = vld [vmem:[%s3 + $0x34] sm:$0xf]
      %v571 = vld [vmem:[%s3 + $0x38] sm:$0xf]
      %v572 = vld [vmem:[%s3 + $0x3c] sm:$0xf]
      %v573 = vld [vmem:[%s4] sm:$0x1]
      %v575 = vperm.slane %v573, 0
      %v593 = vunpack.c.l.b16 %v557
      %v594 = vunpack.c.l.b16 %v558
      %v595 = vunpack.c.l.b16 %v559
      %v596 = vunpack.c.l.b16 %v560
      %v597 = vunpack.c.l.b16 %v561
      %v598 = vunpack.c.l.b16 %v562
      %v599 = vunpack.c.l.b16 %v563
      %v600 = vunpack.c.l.b16 %v564
      %v601 = vunpack.c.l.b16 %v565
      %v602 = vunpack.c.l.b16 %v566
      %v603 = vunpack.c.l.b16 %v567
      %v604 = vunpack.c.l.b16 %v568
      %v605 = vunpack.c.l.b16 %v569
      %v606 = vunpack.c.l.b16 %v570
      %v607 = vunpack.c.l.b16 %v571
      %v608 = vunpack.c.l.b16 %v572
      %v609 = vpack.c.b16 %v594, %v593
      %v610 = vpack.c.b16 %v596, %v595
      %v611 = vpack.c.b16 %v598, %v597
      %v612 = vpack.c.b16 %v600, %v599
      %v613 = vpack.c.b16 %v602, %v601
      %v614 = vpack.c.b16 %v604, %v603
      %v615 = vpack.c.b16 %v606, %v605
      %v616 = vpack.c.b16 %v608, %v607
      %625 = vmatpush.bf16.msra.mxu0 %v616
      %626 = vmatpush.bf16.msra.mxu0 %v615
      %627 = vmatpush.bf16.msra.mxu0 %v614
      %628 = vmatpush.bf16.msra.mxu0 %v613
      %629 = vmatpush.bf16.msra.mxu0 %v612
      %630 = vmatpush.bf16.msra.mxu0 %v611
      %631 = vmatpush.bf16.msra.mxu0 %v610
      %632 = vmatpush.bf16.msra.mxu0 %v609
      %633 = vmatmul.bf16.gmra.mxu0 %v530
      %v634 = vpop.f32.mrf.mxu0
      %v635 = vadd.f32 %v575, %v634
      %v636 = vpop.f32.mrf.mxu0
      %v637 = vadd.f32 %v575, %v636
      %638 = vmatmul.bf16.gmra.mxu0 %v531
      %v639 = vpop.f32.mrf.mxu0
      %v640 = vadd.f32 %v575, %v639
      %v641 = vpop.f32.mrf.mxu0
      %v642 = vadd.f32 %v575, %v641
      %643 = vmatmul.bf16.gmra.mxu0 %v532
      %v644 = vpop.f32.mrf.mxu0
      %v645 = vadd.f32 %v575, %v644
      %v646 = vpop.f32.mrf.mxu0
      %v647 = vadd.f32 %v575, %v646
      %648 = vmatmul.bf16.gmra.mxu0 %v533
      %v649 = vpop.f32.mrf.mxu0
      %v650 = vadd.f32 %v575, %v649
      %v651 = vpop.f32.mrf.mxu0
      %v652 = vadd.f32 %v575, %v651
      %653 = vmatmul.bf16.gmra.mxu0 %v534
      %v654 = vpop.f32.mrf.mxu0
      %v655 = vadd.f32 %v575, %v654
      %v656 = vpop.f32.mrf.mxu0
      %v657 = vadd.f32 %v575, %v656
      %658 = vmatmul.bf16.gmra.mxu0 %v535
      %v659 = vpop.f32.mrf.mxu0
      %v660 = vadd.f32 %v575, %v659
      %v661 = vpop.f32.mrf.mxu0
      %v662 = vadd.f32 %v575, %v661
      %663 = vmatmul.bf16.gmra.mxu0 %v536
      %v664 = vpop.f32.mrf.mxu0
      %v665 = vadd.f32 %v575, %v664
      %v666 = vpop.f32.mrf.mxu0
      %v667 = vadd.f32 %v575, %v666
      %668 = vmatmul.bf16.gmra.mxu0 %v537
      %v669 = vpop.f32.mrf.mxu0
      %v670 = vadd.f32 %v575, %v669
      %v671 = vpop.f32.mrf.mxu0
      %v672 = vadd.f32 %v575, %v671
      %673 = vmatmul.bf16.gmra.mxu0 %v538
      %v674 = vpop.f32.mrf.mxu0
      %v675 = vadd.f32 %v575, %v674
      %v676 = vpop.f32.mrf.mxu0
      %v677 = vadd.f32 %v575, %v676
      %678 = vmatmul.bf16.gmra.mxu0 %v539
      %v679 = vpop.f32.mrf.mxu0
      %v680 = vadd.f32 %v575, %v679
      %v681 = vpop.f32.mrf.mxu0
      %v682 = vadd.f32 %v575, %v681
      %683 = vmatmul.bf16.gmra.mxu0 %v540
      %v684 = vpop.f32.mrf.mxu0
      %v685 = vadd.f32 %v575, %v684
      %v686 = vpop.f32.mrf.mxu0
      %v687 = vadd.f32 %v575, %v686
      %688 = vmatmul.bf16.gmra.mxu0 %v541
      %v689 = vpop.f32.mrf.mxu0
      %v690 = vadd.f32 %v575, %v689
      %v691 = vpop.f32.mrf.mxu0
      %v692 = vadd.f32 %v575, %v691
      %693 = vmatmul.bf16.gmra.mxu0 %v542
      %v694 = vpop.f32.mrf.mxu0
      %v695 = vadd.f32 %v575, %v694
      %v696 = vpop.f32.mrf.mxu0
      %v697 = vadd.f32 %v575, %v696
      %698 = vmatmul.bf16.gmra.mxu0 %v543
      %v699 = vpop.f32.mrf.mxu0
      %v700 = vadd.f32 %v575, %v699
      %v701 = vpop.f32.mrf.mxu0
      %v702 = vadd.f32 %v575, %v701
      %703 = vmatmul.bf16.gmra.mxu0 %v544
      %v704 = vpop.f32.mrf.mxu0
      %v705 = vadd.f32 %v575, %v704
      %v706 = vpop.f32.mrf.mxu0
      %v707 = vadd.f32 %v575, %v706
      %708 = vmatmul.bf16.gmra.mxu0 %v545
      %v709 = vpop.f32.mrf.mxu0
      %v710 = vadd.f32 %v575, %v709
      %v711 = vpop.f32.mrf.mxu0
      %v712 = vadd.f32 %v575, %v711
      %713 = vmatmul.bf16.gmra.mxu0 %v546
      %v714 = vpop.f32.mrf.mxu0
      %v715 = vadd.f32 %v575, %v714
      %v716 = vpop.f32.mrf.mxu0
      %v717 = vadd.f32 %v575, %v716
      %718 = vmatmul.bf16.gmra.mxu0 %v547
      %v719 = vpop.f32.mrf.mxu0
      %v720 = vadd.f32 %v575, %v719
      %v721 = vpop.f32.mrf.mxu0
      %v722 = vadd.f32 %v575, %v721
      %723 = vmatmul.bf16.gmra.mxu0 %v548
      %v724 = vpop.f32.mrf.mxu0
      %v725 = vadd.f32 %v575, %v724
      %v726 = vpop.f32.mrf.mxu0
      %v727 = vadd.f32 %v575, %v726
      %728 = vmatmul.bf16.gmra.mxu0 %v549
      %v729 = vpop.f32.mrf.mxu0
      %v730 = vadd.f32 %v575, %v729
      %v731 = vpop.f32.mrf.mxu0
      %v732 = vadd.f32 %v575, %v731
      %733 = vmatmul.bf16.gmra.mxu0 %v550
      %v734 = vpop.f32.mrf.mxu0
      %v735 = vadd.f32 %v575, %v734
      %v736 = vpop.f32.mrf.mxu0
      %v737 = vadd.f32 %v575, %v736
      %738 = vmatmul.bf16.gmra.mxu0 %v551
      %v739 = vpop.f32.mrf.mxu0
      %v740 = vadd.f32 %v575, %v739
      %v741 = vpop.f32.mrf.mxu0
      %v742 = vadd.f32 %v575, %v741
      %743 = vmatmul.bf16.gmra.mxu0 %v552
      %v744 = vpop.f32.mrf.mxu0
      %v745 = vadd.f32 %v575, %v744
      %v746 = vpop.f32.mrf.mxu0
      %v747 = vadd.f32 %v575, %v746
      %748 = vmatmul.bf16.gmra.mxu0 %v553
      %v749 = vpop.f32.mrf.mxu0
      %v750 = vadd.f32 %v575, %v749
      %v751 = vpop.f32.mrf.mxu0
      %v752 = vadd.f32 %v575, %v751
      %753 = vmatmul.bf16.gmra.mxu0 %v554
      %v754 = vpop.f32.mrf.mxu0
      %v755 = vadd.f32 %v575, %v754
      %v756 = vpop.f32.mrf.mxu0
      %v757 = vadd.f32 %v575, %v756
      %758 = vmatmul.bf16.gmra.mxu0 %v555
      %v759 = vpop.f32.mrf.mxu0
      %v760 = vadd.f32 %v575, %v759
      %v761 = vpop.f32.mrf.mxu0
      %v762 = vadd.f32 %v575, %v761
      %763 = vmatmul.bf16.gmra.mxu0 %v556
      %v764 = vpop.f32.mrf.mxu0
      %v765 = vadd.f32 %v575, %v764
      %v766 = vpop.f32.mrf.mxu0
      %v767 = vadd.f32 %v575, %v766
      %768 = vdwg.mxu0
      %v769 = vmax.f32 %v635, 0.0
      %v770 = vmax.f32 %v637, 0.0
      %v771 = vmax.f32 %v640, 0.0
      %v772 = vmax.f32 %v642, 0.0
      %v773 = vmax.f32 %v645, 0.0
      %v774 = vmax.f32 %v647, 0.0
      %v775 = vmax.f32 %v650, 0.0
      %v776 = vmax.f32 %v652, 0.0
      %v777 = vmax.f32 %v655, 0.0
      %v778 = vmax.f32 %v657, 0.0
      %v779 = vmax.f32 %v660, 0.0
      %v780 = vmax.f32 %v662, 0.0
      %v781 = vmax.f32 %v665, 0.0
      %v782 = vmax.f32 %v667, 0.0
      %v783 = vmax.f32 %v670, 0.0
      %v784 = vmax.f32 %v672, 0.0
      %v785 = vmax.f32 %v675, 0.0
      %v786 = vmax.f32 %v677, 0.0
      %v787 = vmax.f32 %v680, 0.0
      %v788 = vmax.f32 %v682, 0.0
      %v789 = vmax.f32 %v685, 0.0
      %v790 = vmax.f32 %v687, 0.0
      %v791 = vmax.f32 %v690, 0.0
      %v792 = vmax.f32 %v692, 0.0
      %v793 = vmax.f32 %v695, 0.0
      %v794 = vmax.f32 %v697, 0.0
      %v795 = vmax.f32 %v700, 0.0
      %v796 = vmax.f32 %v702, 0.0
      %v797 = vmax.f32 %v705, 0.0
      %v798 = vmax.f32 %v707, 0.0
      %v799 = vmax.f32 %v710, 0.0
      %v800 = vmax.f32 %v712, 0.0
      %v801 = vmax.f32 %v715, 0.0
      %v802 = vmax.f32 %v717, 0.0
      %v803 = vmax.f32 %v720, 0.0
      %v804 = vmax.f32 %v722, 0.0
      %v805 = vmax.f32 %v725, 0.0
      %v806 = vmax.f32 %v727, 0.0
      %v807 = vmax.f32 %v730, 0.0
      %v808 = vmax.f32 %v732, 0.0
      %v809 = vmax.f32 %v735, 0.0
      %v810 = vmax.f32 %v737, 0.0
      %v811 = vmax.f32 %v740, 0.0
      %v812 = vmax.f32 %v742, 0.0
      %v813 = vmax.f32 %v745, 0.0
      %v814 = vmax.f32 %v747, 0.0
      %v815 = vmax.f32 %v750, 0.0
      %v816 = vmax.f32 %v752, 0.0
      %v817 = vmax.f32 %v755, 0.0
      %v818 = vmax.f32 %v757, 0.0
      %v819 = vmax.f32 %v760, 0.0
      %v820 = vmax.f32 %v762, 0.0
      %v821 = vmax.f32 %v765, 0.0
      %v822 = vmax.f32 %v767, 0.0
      %v823 = vlaneseq
      %v824 = vshrl.u32 %v823, 7
      %v825 = vadd.s32 %v824, 8
      %v826 = vadd.s32 %v824, 16
      %vm827 = vcmp.ne.s32.totalorder %v824, 0
      %vm828 = vcmp.ne.s32.totalorder %v825, 0
      %vm829 = vcmp.ne.s32.totalorder %v826, 0
      %vm830 = vmand 0, %vm827
      %vm831 = vmand 0, %vm828
      %vm832 = vmand 0, %vm829
      %vm833 = vmand 1, %vm827
      %vm834 = vmand 1, %vm828
      %vm835 = vmand 1, %vm829
      %vm836 = vcmp.le.s32.totalorder %v824, 16
      %vm837 = vcmp.le.s32.totalorder %v825, 16
      %vm838 = vcmp.le.s32.totalorder %v826, 16
      %vm839 = vmand %vm830, %vm836
      %vm840 = vmand %vm831, %vm837
      %vm841 = vmand %vm832, %vm838
      %vm842 = vmand %vm833, %vm836
      %vm843 = vmand %vm834, %vm837
      %vm844 = vmand %vm835, %vm838
      %v845 = vsel %vm839, 1, 0
      %v846 = vsel %vm840, 1, 0
      %v847 = vsel %vm841, 1, 0
      %v848 = vsel %vm842, 1, 0
      %v849 = vsel %vm843, 1, 0
      %v850 = vsel %vm844, 1, 0
      %v851 = vcvt.s32.f32 %v845
      %v852 = vcvt.s32.f32 %v846
      %v853 = vcvt.s32.f32 %v847
      %v854 = vcvt.s32.f32 %v848
      %v855 = vcvt.s32.f32 %v849
      %v856 = vcvt.s32.f32 %v850
      %v857 = vmul.f32 %v769, %v851
      %v858 = vmul.f32 %v770, %v852
      %v859 = vmul.f32 %v771, %v853
      %v860 = vmul.f32 %v772, %v854
      %v861 = vmul.f32 %v773, %v855
      %v862 = vmul.f32 %v774, %v856
      %v863 = vmul.f32 %v775, %v854
      %v864 = vmul.f32 %v776, %v855
      %v865 = vmul.f32 %v777, %v856
      %v866 = vmul.f32 %v778, %v854
      %v867 = vmul.f32 %v779, %v855
      %v868 = vmul.f32 %v780, %v856
      %v869 = vmul.f32 %v781, %v854
      %v870 = vmul.f32 %v782, %v855
      %v871 = vmul.f32 %v783, %v856
      %v872 = vmul.f32 %v784, %v854
      %v873 = vmul.f32 %v785, %v855
      %v874 = vmul.f32 %v786, %v856
      %v875 = vmul.f32 %v787, %v854
      %v876 = vmul.f32 %v788, %v855
      %v877 = vmul.f32 %v789, %v856
      %v878 = vmul.f32 %v790, %v854
      %v879 = vmul.f32 %v791, %v855
      %v880 = vmul.f32 %v792, %v856
      %v881 = vmul.f32 %v793, %v854
      %v882 = vmul.f32 %v794, %v855
      %v883 = vmul.f32 %v795, %v856
      %v884 = vmul.f32 %v796, %v854
      %v885 = vmul.f32 %v797, %v855
      %v886 = vmul.f32 %v798, %v856
      %v887 = vmul.f32 %v799, %v854
      %v888 = vmul.f32 %v800, %v855
      %v889 = vmul.f32 %v801, %v856
      %v890 = vmul.f32 %v802, %v854
      %v891 = vmul.f32 %v803, %v855
      %v892 = vmul.f32 %v804, %v856
      %v893 = vmul.f32 %v805, %v854
      %v894 = vmul.f32 %v806, %v855
      %v895 = vmul.f32 %v807, %v856
      %v896 = vmul.f32 %v808, %v854
      %v897 = vmul.f32 %v809, %v855
      %v898 = vmul.f32 %v810, %v856
      %v899 = vmul.f32 %v811, %v854
      %v900 = vmul.f32 %v812, %v855
      %v901 = vmul.f32 %v813, %v856
      %v902 = vmul.f32 %v814, %v854
      %v903 = vmul.f32 %v815, %v855
      %v904 = vmul.f32 %v816, %v856
      %v905 = vmul.f32 %v817, %v854
      %v906 = vmul.f32 %v818, %v855
      %v907 = vmul.f32 %v819, %v856
      %v908 = vmul.f32 %v820, %v851
      %v909 = vmul.f32 %v821, %v852
      %v910 = vmul.f32 %v822, %v853
      %v911 = vpack.c.bf16 %v857, %v857
      %v912 = vpack.c.bf16 %v858, %v858
      %v913 = vpack.c.bf16 %v860, %v860
      %v914 = vpack.c.bf16 %v861, %v861
      %v915 = vpack.c.bf16 %v863, %v863
      %v916 = vpack.c.bf16 %v864, %v864
      %v917 = vpack.c.bf16 %v866, %v866
      %v918 = vpack.c.bf16 %v867, %v867
      %v919 = vpack.c.bf16 %v869, %v869
      %v920 = vpack.c.bf16 %v870, %v870
      %v921 = vpack.c.bf16 %v872, %v872
      %v922 = vpack.c.bf16 %v873, %v873
      %v923 = vpack.c.bf16 %v875, %v875
      %v924 = vpack.c.bf16 %v876, %v876
      %v925 = vpack.c.bf16 %v878, %v878
      %v926 = vpack.c.bf16 %v879, %v879
      %v927 = vpack.c.bf16 %v881, %v881
      %v928 = vpack.c.bf16 %v882, %v882
      %v929 = vpack.c.bf16 %v884, %v884
      %v930 = vpack.c.bf16 %v885, %v885
      %v931 = vpack.c.bf16 %v887, %v887
      %v932 = vpack.c.bf16 %v888, %v888
      %v933 = vpack.c.bf16 %v890, %v890
      %v934 = vpack.c.bf16 %v891, %v891
      %v935 = vpack.c.bf16 %v893, %v893
      %v936 = vpack.c.bf16 %v894, %v894
      %v937 = vpack.c.bf16 %v896, %v896
      %v938 = vpack.c.bf16 %v897, %v897
      %v939 = vpack.c.bf16 %v899, %v899
      %v940 = vpack.c.bf16 %v900, %v900
      %v941 = vpack.c.bf16 %v902, %v902
      %v942 = vpack.c.bf16 %v903, %v903
      %v943 = vpack.c.bf16 %v905, %v905
      %v944 = vpack.c.bf16 %v906, %v906
      %v945 = vpack.c.bf16 %v908, %v908
      %v946 = vpack.c.bf16 %v909, %v909
      %v947 = vrot.slane %v857, 1
      %v948 = vrot.slane %v860, 1
      %v949 = vrot.slane %v863, 1
      %v950 = vrot.slane %v866, 1
      %v951 = vrot.slane %v869, 1
      %v952 = vrot.slane %v872, 1
      %v953 = vrot.slane %v875, 1
      %v954 = vrot.slane %v878, 1
      %v955 = vrot.slane %v881, 1
      %v956 = vrot.slane %v884, 1
      %v957 = vrot.slane %v887, 1
      %v958 = vrot.slane %v890, 1
      %v959 = vrot.slane %v893, 1
      %v960 = vrot.slane %v896, 1
      %v961 = vrot.slane %v899, 1
      %v962 = vrot.slane %v902, 1
      %v963 = vrot.slane %v905, 1
      %v964 = vrot.slane %v908, 1
      %v965 = vrot.slane %v858, 1
      %v966 = vrot.slane %v861, 1
      %v967 = vrot.slane %v864, 1
      %v968 = vrot.slane %v867, 1
      %v969 = vrot.slane %v870, 1
      %v970 = vrot.slane %v873, 1
      %v971 = vrot.slane %v876, 1
      %v972 = vrot.slane %v879, 1
      %v973 = vrot.slane %v882, 1
      %v974 = vrot.slane %v885, 1
      %v975 = vrot.slane %v888, 1
      %v976 = vrot.slane %v891, 1
      %v977 = vrot.slane %v894, 1
      %v978 = vrot.slane %v897, 1
      %v979 = vrot.slane %v900, 1
      %v980 = vrot.slane %v903, 1
      %v981 = vrot.slane %v906, 1
      %v982 = vrot.slane %v909, 1
      %v983 = vrot.slane %v859, 1
      %v984 = vrot.slane %v862, 1
      %v985 = vrot.slane %v865, 1
      %v986 = vrot.slane %v868, 1
      %v987 = vrot.slane %v871, 1
      %v988 = vrot.slane %v874, 1
      %v989 = vrot.slane %v877, 1
      %v990 = vrot.slane %v880, 1
      %v991 = vrot.slane %v883, 1
      %v992 = vrot.slane %v886, 1
      %v993 = vrot.slane %v889, 1
      %v994 = vrot.slane %v892, 1
      %v995 = vrot.slane %v895, 1
      %v996 = vrot.slane %v898, 1
      %v997 = vrot.slane %v901, 1
      %v998 = vrot.slane %v904, 1
      %v999 = vrot.slane %v907, 1
      %v1000 = vrot.slane %v910, 1
      %vm1001 = vcmp.lt.s32.totalorder %v824, 7
      %v1002 = vsel %vm1001, %v965, %v983
      %v1003 = vsel %vm1001, %v966, %v984
      %v1004 = vsel %vm1001, %v967, %v985
      %v1005 = vsel %vm1001, %v968, %v986
      %v1006 = vsel %vm1001, %v969, %v987
      %v1007 = vsel %vm1001, %v970, %v988
      %v1008 = vsel %vm1001, %v971, %v989
      %v1009 = vsel %vm1001, %v972, %v990
      %v1010 = vsel %vm1001, %v973, %v991
      %v1011 = vsel %vm1001, %v974, %v992
      %v1012 = vsel %vm1001, %v975, %v993
      %v1013 = vsel %vm1001, %v976, %v994
      %v1014 = vsel %vm1001, %v977, %v995
      %v1015 = vsel %vm1001, %v978, %v996
      %v1016 = vsel %vm1001, %v979, %v997
      %v1017 = vsel %vm1001, %v980, %v998
      %v1018 = vsel %vm1001, %v981, %v999
      %v1019 = vsel %vm1001, %v982, %v1000
      %v1020 = vsel %vm1001, %v947, %v965
      %v1021 = vsel %vm1001, %v948, %v966
      %v1022 = vsel %vm1001, %v949, %v967
      %v1023 = vsel %vm1001, %v950, %v968
      %v1024 = vsel %vm1001, %v951, %v969
      %v1025 = vsel %vm1001, %v952, %v970
      %v1026 = vsel %vm1001, %v953, %v971
      %v1027 = vsel %vm1001, %v954, %v972
      %v1028 = vsel %vm1001, %v955, %v973
      %v1029 = vsel %vm1001, %v956, %v974
      %v1030 = vsel %vm1001, %v957, %v975
      %v1031 = vsel %vm1001, %v958, %v976
      %v1032 = vsel %vm1001, %v959, %v977
      %v1033 = vsel %vm1001, %v960, %v978
      %v1034 = vsel %vm1001, %v961, %v979
      %v1035 = vsel %vm1001, %v962, %v980
      %v1036 = vsel %vm1001, %v963, %v981
      %v1037 = vsel %vm1001, %v964, %v982
      %v1038 = vpack.c.bf16 %v1020, %v1020
      %v1039 = vpack.c.bf16 %v1002, %v1002
      %v1040 = vpack.c.bf16 %v1021, %v1021
      %v1041 = vpack.c.bf16 %v1003, %v1003
      %v1042 = vpack.c.bf16 %v1022, %v1022
      %v1043 = vpack.c.bf16 %v1004, %v1004
      %v1044 = vpack.c.bf16 %v1023, %v1023
      %v1045 = vpack.c.bf16 %v1005, %v1005
      %v1046 = vpack.c.bf16 %v1024, %v1024
      %v1047 = vpack.c.bf16 %v1006, %v1006
      %v1048 = vpack.c.bf16 %v1025, %v1025
      %v1049 = vpack.c.bf16 %v1007, %v1007
      %v1050 = vpack.c.bf16 %v1026, %v1026
      %v1051 = vpack.c.bf16 %v1008, %v1008
      %v1052 = vpack.c.bf16 %v1027, %v1027
      %v1053 = vpack.c.bf16 %v1009, %v1009
      %v1054 = vpack.c.bf16 %v1028, %v1028
      %v1055 = vpack.c.bf16 %v1010, %v1010
      %v1056 = vpack.c.bf16 %v1029, %v1029
      %v1057 = vpack.c.bf16 %v1011, %v1011
      %v1058 = vpack.c.bf16 %v1030, %v1030
      %v1059 = vpack.c.bf16 %v1012, %v1012
      %v1060 = vpack.c.bf16 %v1031, %v1031
      %v1061 = vpack.c.bf16 %v1013, %v1013
      %v1062 = vpack.c.bf16 %v1032, %v1032
      %v1063 = vpack.c.bf16 %v1014, %v1014
      %v1064 = vpack.c.bf16 %v1033, %v1033
      %v1065 = vpack.c.bf16 %v1015, %v1015
      %v1066 = vpack.c.bf16 %v1034, %v1034
      %v1067 = vpack.c.bf16 %v1016, %v1016
      %v1068 = vpack.c.bf16 %v1035, %v1035
      %v1069 = vpack.c.bf16 %v1017, %v1017
      %v1070 = vpack.c.bf16 %v1036, %v1036
      %v1071 = vpack.c.bf16 %v1018, %v1018
      %v1072 = vpack.c.bf16 %v1037, %v1037
      %v1073 = vpack.c.bf16 %v1019, %v1019
      %v1074 = vrot.slane %v857, 2
      %v1075 = vrot.slane %v860, 2
      %v1076 = vrot.slane %v863, 2
      %v1077 = vrot.slane %v866, 2
      %v1078 = vrot.slane %v869, 2
      %v1079 = vrot.slane %v872, 2
      %v1080 = vrot.slane %v875, 2
      %v1081 = vrot.slane %v878, 2
      %v1082 = vrot.slane %v881, 2
      %v1083 = vrot.slane %v884, 2
      %v1084 = vrot.slane %v887, 2
      %v1085 = vrot.slane %v890, 2
      %v1086 = vrot.slane %v893, 2
      %v1087 = vrot.slane %v896, 2
      %v1088 = vrot.slane %v899, 2
      %v1089 = vrot.slane %v902, 2
      %v1090 = vrot.slane %v905, 2
      %v1091 = vrot.slane %v908, 2
      %v1092 = vrot.slane %v858, 2
      %v1093 = vrot.slane %v861, 2
      %v1094 = vrot.slane %v864, 2
      %v1095 = vrot.slane %v867, 2
      %v1096 = vrot.slane %v870, 2
      %v1097 = vrot.slane %v873, 2
      %v1098 = vrot.slane %v876, 2
      %v1099 = vrot.slane %v879, 2
      %v1100 = vrot.slane %v882, 2
      %v1101 = vrot.slane %v885, 2
      %v1102 = vrot.slane %v888, 2
      %v1103 = vrot.slane %v891, 2
      %v1104 = vrot.slane %v894, 2
      %v1105 = vrot.slane %v897, 2
      %v1106 = vrot.slane %v900, 2
      %v1107 = vrot.slane %v903, 2
      %v1108 = vrot.slane %v906, 2
      %v1109 = vrot.slane %v909, 2
      %v1110 = vrot.slane %v859, 2
      %v1111 = vrot.slane %v862, 2
      %v1112 = vrot.slane %v865, 2
      %v1113 = vrot.slane %v868, 2
      %v1114 = vrot.slane %v871, 2
      %v1115 = vrot.slane %v874, 2
      %v1116 = vrot.slane %v877, 2
      %v1117 = vrot.slane %v880, 2
      %v1118 = vrot.slane %v883, 2
      %v1119 = vrot.slane %v886, 2
      %v1120 = vrot.slane %v889, 2
      %v1121 = vrot.slane %v892, 2
      %v1122 = vrot.slane %v895, 2
      %v1123 = vrot.slane %v898, 2
      %v1124 = vrot.slane %v901, 2
      %v1125 = vrot.slane %v904, 2
      %v1126 = vrot.slane %v907, 2
      %v1127 = vrot.slane %v910, 2
      %vm1128 = vcmp.lt.s32.totalorder %v824, 6
      %v1129 = vsel %vm1128, %v1092, %v1110
      %v1130 = vsel %vm1128, %v1093, %v1111
      %v1131 = vsel %vm1128, %v1094, %v1112
      %v1132 = vsel %vm1128, %v1095, %v1113
      %v1133 = vsel %vm1128, %v1096, %v1114
      %v1134 = vsel %vm1128, %v1097, %v1115
      %v1135 = vsel %vm1128, %v1098, %v1116
      %v1136 = vsel %vm1128, %v1099, %v1117
      %v1137 = vsel %vm1128, %v1100, %v1118
      %v1138 = vsel %vm1128, %v1101, %v1119
      %v1139 = vsel %vm1128, %v1102, %v1120
      %v1140 = vsel %vm1128, %v1103, %v1121
      %v1141 = vsel %vm1128, %v1104, %v1122
      %v1142 = vsel %vm1128, %v1105, %v1123
      %v1143 = vsel %vm1128, %v1106, %v1124
      %v1144 = vsel %vm1128, %v1107, %v1125
      %v1145 = vsel %vm1128, %v1108, %v1126
      %v1146 = vsel %vm1128, %v1109, %v1127
      %v1147 = vsel %vm1128, %v1074, %v1092
      %v1148 = vsel %vm1128, %v1075, %v1093
      %v1149 = vsel %vm1128, %v1076, %v1094
      %v1150 = vsel %vm1128, %v1077, %v1095
      %v1151 = vsel %vm1128, %v1078, %v1096
      %v1152 = vsel %vm1128, %v1079, %v1097
      %v1153 = vsel %vm1128, %v1080, %v1098
      %v1154 = vsel %vm1128, %v1081, %v1099
      %v1155 = vsel %vm1128, %v1082, %v1100
      %v1156 = vsel %vm1128, %v1083, %v1101
      %v1157 = vsel %vm1128, %v1084, %v1102
      %v1158 = vsel %vm1128, %v1085, %v1103
      %v1159 = vsel %vm1128, %v1086, %v1104
      %v1160 = vsel %vm1128, %v1087, %v1105
      %v1161 = vsel %vm1128, %v1088, %v1106
      %v1162 = vsel %vm1128, %v1089, %v1107
      %v1163 = vsel %vm1128, %v1090, %v1108
      %v1164 = vsel %vm1128, %v1091, %v1109
      %v1165 = vpack.c.bf16 %v1147, %v1147
      %v1166 = vpack.c.bf16 %v1129, %v1129
      %v1167 = vpack.c.bf16 %v1148, %v1148
      %v1168 = vpack.c.bf16 %v1130, %v1130
      %v1169 = vpack.c.bf16 %v1149, %v1149
      %v1170 = vpack.c.bf16 %v1131, %v1131
      %v1171 = vpack.c.bf16 %v1150, %v1150
      %v1172 = vpack.c.bf16 %v1132, %v1132
      %v1173 = vpack.c.bf16 %v1151, %v1151
      %v1174 = vpack.c.bf16 %v1133, %v1133
      %v1175 = vpack.c.bf16 %v1152, %v1152
      %v1176 = vpack.c.bf16 %v1134, %v1134
      %v1177 = vpack.c.bf16 %v1153, %v1153
      %v1178 = vpack.c.bf16 %v1135, %v1135
      %v1179 = vpack.c.bf16 %v1154, %v1154
      %v1180 = vpack.c.bf16 %v1136, %v1136
      %v1181 = vpack.c.bf16 %v1155, %v1155
      %v1182 = vpack.c.bf16 %v1137, %v1137
      %v1183 = vpack.c.bf16 %v1156, %v1156
      %v1184 = vpack.c.bf16 %v1138, %v1138
      %v1185 = vpack.c.bf16 %v1157, %v1157
      %v1186 = vpack.c.bf16 %v1139, %v1139
      %v1187 = vpack.c.bf16 %v1158, %v1158
      %v1188 = vpack.c.bf16 %v1140, %v1140
      %v1189 = vpack.c.bf16 %v1159, %v1159
      %v1190 = vpack.c.bf16 %v1141, %v1141
      %v1191 = vpack.c.bf16 %v1160, %v1160
      %v1192 = vpack.c.bf16 %v1142, %v1142
      %v1193 = vpack.c.bf16 %v1161, %v1161
      %v1194 = vpack.c.bf16 %v1143, %v1143
      %v1195 = vpack.c.bf16 %v1162, %v1162
      %v1196 = vpack.c.bf16 %v1144, %v1144
      %v1197 = vpack.c.bf16 %v1163, %v1163
      %v1198 = vpack.c.bf16 %v1145, %v1145
      %v1199 = vpack.c.bf16 %v1164, %v1164
      %v1200 = vpack.c.bf16 %v1146, %v1146
      %v1201 = vld [vmem:[%s5] sm:$0xf]
      %v1202 = vld [vmem:[%s5 + $0x4] sm:$0xf]
      %v1203 = vld [vmem:[%s5 + $0x8] sm:$0xf]
      %v1204 = vld [vmem:[%s5 + $0xc] sm:$0xf]
      %v1205 = vld [vmem:[%s5 + $0x10] sm:$0xf]
      %v1206 = vld [vmem:[%s5 + $0x14] sm:$0xf]
      %v1207 = vld [vmem:[%s5 + $0x18] sm:$0xf]
      %v1208 = vld [vmem:[%s5 + $0x1c] sm:$0xf]
      %v1209 = vld [vmem:[%s5 + $0x20] sm:$0xf]
      %v1210 = vld [vmem:[%s5 + $0x24] sm:$0xf]
      %v1211 = vld [vmem:[%s5 + $0x28] sm:$0xf]
      %v1212 = vld [vmem:[%s5 + $0x2c] sm:$0xf]
      %v1213 = vld [vmem:[%s5 + $0x30] sm:$0xf]
      %v1214 = vld [vmem:[%s5 + $0x34] sm:$0xf]
      %v1215 = vld [vmem:[%s5 + $0x38] sm:$0xf]
      %v1216 = vld [vmem:[%s5 + $0x3c] sm:$0xf]
      %s1217 = scalar_lea.vmem %s5, 64
      %v1218 = vld [vmem:[%s1217] sm:$0xf]
      %v1219 = vld [vmem:[%s1217 + $0x4] sm:$0xf]
      %v1220 = vld [vmem:[%s1217 + $0x8] sm:$0xf]
      %v1221 = vld [vmem:[%s1217 + $0xc] sm:$0xf]
      %v1222 = vld [vmem:[%s1217 + $0x10] sm:$0xf]
      %v1223 = vld [vmem:[%s1217 + $0x14] sm:$0xf]
      %v1224 = vld [vmem:[%s1217 + $0x18] sm:$0xf]
      %v1225 = vld [vmem:[%s1217 + $0x1c] sm:$0xf]
      %v1226 = vld [vmem:[%s1217 + $0x20] sm:$0xf]
      %v1227 = vld [vmem:[%s1217 + $0x24] sm:$0xf]
      %v1228 = vld [vmem:[%s1217 + $0x28] sm:$0xf]
      %v1229 = vld [vmem:[%s1217 + $0x2c] sm:$0xf]
      %v1230 = vld [vmem:[%s1217 + $0x30] sm:$0xf]
      %v1231 = vld [vmem:[%s1217 + $0x34] sm:$0xf]
      %v1232 = vld [vmem:[%s1217 + $0x38] sm:$0xf]
      %v1233 = vld [vmem:[%s1217 + $0x3c] sm:$0xf]
      %v1266 = vunpack.c.l.b16 %v1038
      %v1267 = vunpack.c.l.b16 %v1039
      %v1268 = vunpack.c.l.b16 %v1040
      %v1269 = vunpack.c.l.b16 %v1041
      %v1270 = vunpack.c.l.b16 %v1042
      %v1271 = vunpack.c.l.b16 %v1043
      %v1272 = vunpack.c.l.b16 %v1044
      %v1273 = vunpack.c.l.b16 %v1045
      %v1274 = vunpack.c.l.b16 %v1046
      %v1275 = vunpack.c.l.b16 %v1047
      %v1276 = vunpack.c.l.b16 %v1048
      %v1277 = vunpack.c.l.b16 %v1049
      %v1278 = vunpack.c.l.b16 %v1050
      %v1279 = vunpack.c.l.b16 %v1051
      %v1280 = vunpack.c.l.b16 %v1052
      %v1281 = vunpack.c.l.b16 %v1053
      %v1282 = vunpack.c.l.b16 %v1054
      %v1283 = vunpack.c.l.b16 %v1055
      %v1284 = vunpack.c.l.b16 %v1056
      %v1285 = vunpack.c.l.b16 %v1057
      %v1286 = vunpack.c.l.b16 %v1058
      %v1287 = vunpack.c.l.b16 %v1059
      %v1288 = vunpack.c.l.b16 %v1060
      %v1289 = vunpack.c.l.b16 %v1061
      %v1290 = vunpack.c.l.b16 %v1062
      %v1291 = vunpack.c.l.b16 %v1063
      %v1292 = vunpack.c.l.b16 %v1064
      %v1293 = vunpack.c.l.b16 %v1065
      %v1294 = vunpack.c.l.b16 %v1066
      %v1295 = vunpack.c.l.b16 %v1067
      %v1296 = vunpack.c.l.b16 %v1068
      %v1297 = vunpack.c.l.b16 %v1069
      %v1298 = vpack.c.b16 %v1267, %v1266
      %v1299 = vpack.c.b16 %v1269, %v1268
      %v1300 = vpack.c.b16 %v1271, %v1270
      %v1301 = vpack.c.b16 %v1273, %v1272
      %v1302 = vpack.c.b16 %v1275, %v1274
      %v1303 = vpack.c.b16 %v1277, %v1276
      %v1304 = vpack.c.b16 %v1279, %v1278
      %v1305 = vpack.c.b16 %v1281, %v1280
      %v1306 = vpack.c.b16 %v1283, %v1282
      %v1307 = vpack.c.b16 %v1285, %v1284
      %v1308 = vpack.c.b16 %v1287, %v1286
      %v1309 = vpack.c.b16 %v1289, %v1288
      %v1310 = vpack.c.b16 %v1291, %v1290
      %v1311 = vpack.c.b16 %v1293, %v1292
      %v1312 = vpack.c.b16 %v1295, %v1294
      %v1313 = vpack.c.b16 %v1297, %v1296
      %v1346 = vunpack.c.l.b16 %v1218
      %v1347 = vunpack.c.l.b16 %v1219
      %v1348 = vunpack.c.l.b16 %v1220
      %v1349 = vunpack.c.l.b16 %v1221
      %v1350 = vunpack.c.l.b16 %v1222
      %v1351 = vunpack.c.l.b16 %v1223
      %v1352 = vunpack.c.l.b16 %v1224
      %v1353 = vunpack.c.l.b16 %v1225
      %v1354 = vunpack.c.l.b16 %v1226
      %v1355 = vunpack.c.l.b16 %v1227
      %v1356 = vunpack.c.l.b16 %v1228
      %v1357 = vunpack.c.l.b16 %v1229
      %v1358 = vunpack.c.l.b16 %v1230
      %v1359 = vunpack.c.l.b16 %v1231
      %v1360 = vunpack.c.l.b16 %v1232
      %v1361 = vunpack.c.l.b16 %v1233
      %v1362 = vpack.c.b16 %v1347, %v1346
      %v1363 = vpack.c.b16 %v1349, %v1348
      %v1364 = vpack.c.b16 %v1351, %v1350
      %v1365 = vpack.c.b16 %v1353, %v1352
      %v1366 = vpack.c.b16 %v1355, %v1354
      %v1367 = vpack.c.b16 %v1357, %v1356
      %v1368 = vpack.c.b16 %v1359, %v1358
      %v1369 = vpack.c.b16 %v1361, %v1360
      %1378 = vmatpush.bf16.msra.mxu0 %v1369
      %1379 = vmatpush.bf16.msra.mxu0 %v1368
      %1380 = vmatpush.bf16.msra.mxu0 %v1367
      %1381 = vmatpush.bf16.msra.mxu0 %v1366
      %1382 = vmatpush.bf16.msra.mxu0 %v1365
      %1383 = vmatpush.bf16.msra.mxu0 %v1364
      %1384 = vmatpush.bf16.msra.mxu0 %v1363
      %1385 = vmatpush.bf16.msra.mxu0 %v1362
      %1386 = vmatmul.bf16.gmra.mxu0 %v1298
      %v1387 = vpop.f32.mrf.mxu0
      %v1388 = vadd.f32 0.0, %v1387
      %v1389 = vpop.f32.mrf.mxu0
      %v1390 = vadd.f32 0.0, %v1389
      %1391 = vmatmul.bf16.gmra.mxu0 %v1299
      %v1392 = vpop.f32.mrf.mxu0
      %v1393 = vadd.f32 0.0, %v1392
      %v1394 = vpop.f32.mrf.mxu0
      %v1395 = vadd.f32 0.0, %v1394
      %1396 = vmatmul.bf16.gmra.mxu0 %v1300
      %v1397 = vpop.f32.mrf.mxu0
      %v1398 = vadd.f32 0.0, %v1397
      %v1399 = vpop.f32.mrf.mxu0
      %v1400 = vadd.f32 0.0, %v1399
      %1401 = vmatmul.bf16.gmra.mxu0 %v1301
      %v1402 = vpop.f32.mrf.mxu0
      %v1403 = vadd.f32 0.0, %v1402
      %v1404 = vpop.f32.mrf.mxu0
      %v1405 = vadd.f32 0.0, %v1404
      %1406 = vmatmul.bf16.gmra.mxu0 %v1302
      %v1407 = vpop.f32.mrf.mxu0
      %v1408 = vadd.f32 0.0, %v1407
      %v1409 = vpop.f32.mrf.mxu0
      %v1410 = vadd.f32 0.0, %v1409
      %1411 = vmatmul.bf16.gmra.mxu0 %v1303
      %v1412 = vpop.f32.mrf.mxu0
      %v1413 = vadd.f32 0.0, %v1412
      %v1414 = vpop.f32.mrf.mxu0
      %v1415 = vadd.f32 0.0, %v1414
      %1416 = vmatmul.bf16.gmra.mxu0 %v1304
      %v1417 = vpop.f32.mrf.mxu0
      %v1418 = vadd.f32 0.0, %v1417
      %v1419 = vpop.f32.mrf.mxu0
      %v1420 = vadd.f32 0.0, %v1419
      %1421 = vmatmul.bf16.gmra.mxu0 %v1305
      %v1422 = vpop.f32.mrf.mxu0
      %v1423 = vadd.f32 0.0, %v1422
      %v1424 = vpop.f32.mrf.mxu0
      %v1425 = vadd.f32 0.0, %v1424
      %1426 = vmatmul.bf16.gmra.mxu0 %v1306
      %v1427 = vpop.f32.mrf.mxu0
      %v1428 = vadd.f32 0.0, %v1427
      %v1429 = vpop.f32.mrf.mxu0
      %v1430 = vadd.f32 0.0, %v1429
      %1431 = vmatmul.bf16.gmra.mxu0 %v1307
      %v1432 = vpop.f32.mrf.mxu0
      %v1433 = vadd.f32 0.0, %v1432
      %v1434 = vpop.f32.mrf.mxu0
      %v1435 = vadd.f32 0.0, %v1434
      %1436 = vmatmul.bf16.gmra.mxu0 %v1308
      %v1437 = vpop.f32.mrf.mxu0
      %v1438 = vadd.f32 0.0, %v1437
      %v1439 = vpop.f32.mrf.mxu0
      %v1440 = vadd.f32 0.0, %v1439
      %1441 = vmatmul.bf16.gmra.mxu0 %v1309
      %v1442 = vpop.f32.mrf.mxu0
      %v1443 = vadd.f32 0.0, %v1442
      %v1444 = vpop.f32.mrf.mxu0
      %v1445 = vadd.f32 0.0, %v1444
      %1446 = vmatmul.bf16.gmra.mxu0 %v1310
      %v1447 = vpop.f32.mrf.mxu0
      %v1448 = vadd.f32 0.0, %v1447
      %v1449 = vpop.f32.mrf.mxu0
      %v1450 = vadd.f32 0.0, %v1449
      %1451 = vmatmul.bf16.gmra.mxu0 %v1311
      %v1452 = vpop.f32.mrf.mxu0
      %v1453 = vadd.f32 0.0, %v1452
      %v1454 = vpop.f32.mrf.mxu0
      %v1455 = vadd.f32 0.0, %v1454
      %1456 = vmatmul.bf16.gmra.mxu0 %v1312
      %v1457 = vpop.f32.mrf.mxu0
      %v1458 = vadd.f32 0.0, %v1457
      %v1459 = vpop.f32.mrf.mxu0
      %v1460 = vadd.f32 0.0, %v1459
      %1461 = vmatmul.bf16.gmra.mxu0 %v1313
      %v1462 = vpop.f32.mrf.mxu0
      %v1463 = vadd.f32 0.0, %v1462
      %v1464 = vpop.f32.mrf.mxu0
      %v1465 = vadd.f32 0.0, %v1464
      %1466 = vdwg.mxu0
      %v1499 = vunpack.c.l.b16 %v911
      %v1500 = vunpack.c.l.b16 %v912
      %v1501 = vunpack.c.l.b16 %v913
      %v1502 = vunpack.c.l.b16 %v914
      %v1503 = vunpack.c.l.b16 %v915
      %v1504 = vunpack.c.l.b16 %v916
      %v1505 = vunpack.c.l.b16 %v917
      %v1506 = vunpack.c.l.b16 %v918
      %v1507 = vunpack.c.l.b16 %v919
      %v1508 = vunpack.c.l.b16 %v920
      %v1509 = vunpack.c.l.b16 %v921
      %v1510 = vunpack.c.l.b16 %v922
      %v1511 = vunpack.c.l.b16 %v923
      %v1512 = vunpack.c.l.b16 %v924
      %v1513 = vunpack.c.l.b16 %v925
      %v1514 = vunpack.c.l.b16 %v926
      %v1515 = vunpack.c.l.b16 %v927
      %v1516 = vunpack.c.l.b16 %v928
      %v1517 = vunpack.c.l.b16 %v929
      %v1518 = vunpack.c.l.b16 %v930
      %v1519 = vunpack.c.l.b16 %v931
      %v1520 = vunpack.c.l.b16 %v932
      %v1521 = vunpack.c.l.b16 %v933
      %v1522 = vunpack.c.l.b16 %v934
      %v1523 = vunpack.c.l.b16 %v935
      %v1524 = vunpack.c.l.b16 %v936
      %v1525 = vunpack.c.l.b16 %v937
      %v1526 = vunpack.c.l.b16 %v938
      %v1527 = vunpack.c.l.b16 %v939
      %v1528 = vunpack.c.l.b16 %v940
      %v1529 = vunpack.c.l.b16 %v941
      %v1530 = vunpack.c.l.b16 %v942
      %v1531 = vpack.c.b16 %v1500, %v1499
      %v1532 = vpack.c.b16 %v1502, %v1501
      %v1533 = vpack.c.b16 %v1504, %v1503
      %v1534 = vpack.c.b16 %v1506, %v1505
      %v1535 = vpack.c.b16 %v1508, %v1507
      %v1536 = vpack.c.b16 %v1510, %v1509
      %v1537 = vpack.c.b16 %v1512, %v1511
      %v1538 = vpack.c.b16 %v1514, %v1513
      %v1539 = vpack.c.b16 %v1516, %v1515
      %v1540 = vpack.c.b16 %v1518, %v1517
      %v1541 = vpack.c.b16 %v1520, %v1519
      %v1542 = vpack.c.b16 %v1522, %v1521
      %v1543 = vpack.c.b16 %v1524, %v1523
      %v1544 = vpack.c.b16 %v1526, %v1525
      %v1545 = vpack.c.b16 %v1528, %v1527
      %v1546 = vpack.c.b16 %v1530, %v1529
      %v1579 = vunpack.c.l.b16 %v1201
      %v1580 = vunpack.c.l.b16 %v1202
      %v1581 = vunpack.c.l.b16 %v1203
      %v1582 = vunpack.c.l.b16 %v1204
      %v1583 = vunpack.c.l.b16 %v1205
      %v1584 = vunpack.c.l.b16 %v1206
      %v1585 = vunpack.c.l.b16 %v1207
      %v1586 = vunpack.c.l.b16 %v1208
      %v1587 = vunpack.c.l.b16 %v1209
      %v1588 = vunpack.c.l.b16 %v1210
      %v1589 = vunpack.c.l.b16 %v1211
      %v1590 = vunpack.c.l.b16 %v1212
      %v1591 = vunpack.c.l.b16 %v1213
      %v1592 = vunpack.c.l.b16 %v1214
      %v1593 = vunpack.c.l.b16 %v1215
      %v1594 = vunpack.c.l.b16 %v1216
      %v1595 = vpack.c.b16 %v1580, %v1579
      %v1596 = vpack.c.b16 %v1582, %v1581
      %v1597 = vpack.c.b16 %v1584, %v1583
      %v1598 = vpack.c.b16 %v1586, %v1585
      %v1599 = vpack.c.b16 %v1588, %v1587
      %v1600 = vpack.c.b16 %v1590, %v1589
      %v1601 = vpack.c.b16 %v1592, %v1591
      %v1602 = vpack.c.b16 %v1594, %v1593
      %1611 = vmatpush.bf16.msra.mxu0 %v1602
      %1612 = vmatpush.bf16.msra.mxu0 %v1601
      %1613 = vmatpush.bf16.msra.mxu0 %v1600
      %1614 = vmatpush.bf16.msra.mxu0 %v1599
      %1615 = vmatpush.bf16.msra.mxu0 %v1598
      %1616 = vmatpush.bf16.msra.mxu0 %v1597
      %1617 = vmatpush.bf16.msra.mxu0 %v1596
      %1618 = vmatpush.bf16.msra.mxu0 %v1595
      %1619 = vmatmul.bf16.gmra.mxu0 %v1531
      %v1620 = vpop.f32.mrf.mxu0
      %v1621 = vadd.f32 %v1388, %v1620
      %v1622 = vpop.f32.mrf.mxu0
      %v1623 = vadd.f32 %v1390, %v1622
      %1624 = vmatmul.bf16.gmra.mxu0 %v1532
      %v1625 = vpop.f32.mrf.mxu0
      %v1626 = vadd.f32 %v1393, %v1625
      %v1627 = vpop.f32.mrf.mxu0
      %v1628 = vadd.f32 %v1395, %v1627
      %1629 = vmatmul.bf16.gmra.mxu0 %v1533
      %v1630 = vpop.f32.mrf.mxu0
      %v1631 = vadd.f32 %v1398, %v1630
      %v1632 = vpop.f32.mrf.mxu0
      %v1633 = vadd.f32 %v1400, %v1632
      %1634 = vmatmul.bf16.gmra.mxu0 %v1534
      %v1635 = vpop.f32.mrf.mxu0
      %v1636 = vadd.f32 %v1403, %v1635
      %v1637 = vpop.f32.mrf.mxu0
      %v1638 = vadd.f32 %v1405, %v1637
      %1639 = vmatmul.bf16.gmra.mxu0 %v1535
      %v1640 = vpop.f32.mrf.mxu0
      %v1641 = vadd.f32 %v1408, %v1640
      %v1642 = vpop.f32.mrf.mxu0
      %v1643 = vadd.f32 %v1410, %v1642
      %1644 = vmatmul.bf16.gmra.mxu0 %v1536
      %v1645 = vpop.f32.mrf.mxu0
      %v1646 = vadd.f32 %v1413, %v1645
      %v1647 = vpop.f32.mrf.mxu0
      %v1648 = vadd.f32 %v1415, %v1647
      %1649 = vmatmul.bf16.gmra.mxu0 %v1537
      %v1650 = vpop.f32.mrf.mxu0
      %v1651 = vadd.f32 %v1418, %v1650
      %v1652 = vpop.f32.mrf.mxu0
      %v1653 = vadd.f32 %v1420, %v1652
      %1654 = vmatmul.bf16.gmra.mxu0 %v1538
      %v1655 = vpop.f32.mrf.mxu0
      %v1656 = vadd.f32 %v1423, %v1655
      %v1657 = vpop.f32.mrf.mxu0
      %v1658 = vadd.f32 %v1425, %v1657
      %1659 = vmatmul.bf16.gmra.mxu0 %v1539
      %v1660 = vpop.f32.mrf.mxu0
      %v1661 = vadd.f32 %v1428, %v1660
      %v1662 = vpop.f32.mrf.mxu0
      %v1663 = vadd.f32 %v1430, %v1662
      %1664 = vmatmul.bf16.gmra.mxu0 %v1540
      %v1665 = vpop.f32.mrf.mxu0
      %v1666 = vadd.f32 %v1433, %v1665
      %v1667 = vpop.f32.mrf.mxu0
      %v1668 = vadd.f32 %v1435, %v1667
      %1669 = vmatmul.bf16.gmra.mxu0 %v1541
      %v1670 = vpop.f32.mrf.mxu0
      %v1671 = vadd.f32 %v1438, %v1670
      %v1672 = vpop.f32.mrf.mxu0
      %v1673 = vadd.f32 %v1440, %v1672
      %1674 = vmatmul.bf16.gmra.mxu0 %v1542
      %v1675 = vpop.f32.mrf.mxu0
      %v1676 = vadd.f32 %v1443, %v1675
      %v1677 = vpop.f32.mrf.mxu0
      %v1678 = vadd.f32 %v1445, %v1677
      %1679 = vmatmul.bf16.gmra.mxu0 %v1543
      %v1680 = vpop.f32.mrf.mxu0
      %v1681 = vadd.f32 %v1448, %v1680
      %v1682 = vpop.f32.mrf.mxu0
      %v1683 = vadd.f32 %v1450, %v1682
      %1684 = vmatmul.bf16.gmra.mxu0 %v1544
      %v1685 = vpop.f32.mrf.mxu0
      %v1686 = vadd.f32 %v1453, %v1685
      %v1687 = vpop.f32.mrf.mxu0
      %v1688 = vadd.f32 %v1455, %v1687
      %1689 = vmatmul.bf16.gmra.mxu0 %v1545
      %v1690 = vpop.f32.mrf.mxu0
      %v1691 = vadd.f32 %v1458, %v1690
      %v1692 = vpop.f32.mrf.mxu0
      %v1693 = vadd.f32 %v1460, %v1692
      %1694 = vmatmul.bf16.gmra.mxu0 %v1546
      %v1695 = vpop.f32.mrf.mxu0
      %v1696 = vadd.f32 %v1463, %v1695
      %v1697 = vpop.f32.mrf.mxu0
      %v1698 = vadd.f32 %v1465, %v1697
      %1699 = vdwg.mxu0
      %s1700 = scalar_lea.vmem %s5, 128
      %v1701 = vld [vmem:[%s1700] sm:$0xf]
      %v1702 = vld [vmem:[%s1700 + $0x4] sm:$0xf]
      %v1703 = vld [vmem:[%s1700 + $0x8] sm:$0xf]
      %v1704 = vld [vmem:[%s1700 + $0xc] sm:$0xf]
      %v1705 = vld [vmem:[%s1700 + $0x10] sm:$0xf]
      %v1706 = vld [vmem:[%s1700 + $0x14] sm:$0xf]
      %v1707 = vld [vmem:[%s1700 + $0x18] sm:$0xf]
      %v1708 = vld [vmem:[%s1700 + $0x1c] sm:$0xf]
      %v1709 = vld [vmem:[%s1700 + $0x20] sm:$0xf]
      %v1710 = vld [vmem:[%s1700 + $0x24] sm:$0xf]
      %v1711 = vld [vmem:[%s1700 + $0x28] sm:$0xf]
      %v1712 = vld [vmem:[%s1700 + $0x2c] sm:$0xf]
      %v1713 = vld [vmem:[%s1700 + $0x30] sm:$0xf]
      %v1714 = vld [vmem:[%s1700 + $0x34] sm:$0xf]
      %v1715 = vld [vmem:[%s1700 + $0x38] sm:$0xf]
      %v1716 = vld [vmem:[%s1700 + $0x3c] sm:$0xf]
      %v1749 = vunpack.c.l.b16 %v1165
      %v1750 = vunpack.c.l.b16 %v1166
      %v1751 = vunpack.c.l.b16 %v1167
      %v1752 = vunpack.c.l.b16 %v1168
      %v1753 = vunpack.c.l.b16 %v1169
      %v1754 = vunpack.c.l.b16 %v1170
      %v1755 = vunpack.c.l.b16 %v1171
      %v1756 = vunpack.c.l.b16 %v1172
      %v1757 = vunpack.c.l.b16 %v1173
      %v1758 = vunpack.c.l.b16 %v1174
      %v1759 = vunpack.c.l.b16 %v1175
      %v1760 = vunpack.c.l.b16 %v1176
      %v1761 = vunpack.c.l.b16 %v1177
      %v1762 = vunpack.c.l.b16 %v1178
      %v1763 = vunpack.c.l.b16 %v1179
      %v1764 = vunpack.c.l.b16 %v1180
      %v1765 = vunpack.c.l.b16 %v1181
      %v1766 = vunpack.c.l.b16 %v1182
      %v1767 = vunpack.c.l.b16 %v1183
      %v1768 = vunpack.c.l.b16 %v1184
      %v1769 = vunpack.c.l.b16 %v1185
      %v1770 = vunpack.c.l.b16 %v1186
      %v1771 = vunpack.c.l.b16 %v1187
      %v1772 = vunpack.c.l.b16 %v1188
      %v1773 = vunpack.c.l.b16 %v1189
      %v1774 = vunpack.c.l.b16 %v1190
      %v1775 = vunpack.c.l.b16 %v1191
      %v1776 = vunpack.c.l.b16 %v1192
      %v1777 = vunpack.c.l.b16 %v1193
      %v1778 = vunpack.c.l.b16 %v1194
      %v1779 = vunpack.c.l.b16 %v1195
      %v1780 = vunpack.c.l.b16 %v1196
      %v1781 = vpack.c.b16 %v1750, %v1749
      %v1782 = vpack.c.b16 %v1752, %v1751
      %v1783 = vpack.c.b16 %v1754, %v1753
      %v1784 = vpack.c.b16 %v1756, %v1755
      %v1785 = vpack.c.b16 %v1758, %v1757
      %v1786 = vpack.c.b16 %v1760, %v1759
      %v1787 = vpack.c.b16 %v1762, %v1761
      %v1788 = vpack.c.b16 %v1764, %v1763
      %v1789 = vpack.c.b16 %v1766, %v1765
      %v1790 = vpack.c.b16 %v1768, %v1767
      %v1791 = vpack.c.b16 %v1770, %v1769
      %v1792 = vpack.c.b16 %v1772, %v1771
      %v1793 = vpack.c.b16 %v1774, %v1773
      %v1794 = vpack.c.b16 %v1776, %v1775
      %v1795 = vpack.c.b16 %v1778, %v1777
      %v1796 = vpack.c.b16 %v1780, %v1779
      %v1829 = vunpack.c.l.b16 %v1701
      %v1830 = vunpack.c.l.b16 %v1702
      %v1831 = vunpack.c.l.b16 %v1703
      %v1832 = vunpack.c.l.b16 %v1704
      %v1833 = vunpack.c.l.b16 %v1705
      %v1834 = vunpack.c.l.b16 %v1706
      %v1835 = vunpack.c.l.b16 %v1707
      %v1836 = vunpack.c.l.b16 %v1708
      %v1837 = vunpack.c.l.b16 %v1709
      %v1838 = vunpack.c.l.b16 %v1710
      %v1839 = vunpack.c.l.b16 %v1711
      %v1840 = vunpack.c.l.b16 %v1712
      %v1841 = vunpack.c.l.b16 %v1713
      %v1842 = vunpack.c.l.b16 %v1714
      %v1843 = vunpack.c.l.b16 %v1715
      %v1844 = vunpack.c.l.b16 %v1716
      %v1845 = vpack.c.b16 %v1830, %v1829
      %v1846 = vpack.c.b16 %v1832, %v1831
      %v1847 = vpack.c.b16 %v1834, %v1833
      %v1848 = vpack.c.b16 %v1836, %v1835
      %v1849 = vpack.c.b16 %v1838, %v1837
      %v1850 = vpack.c.b16 %v1840, %v1839
      %v1851 = vpack.c.b16 %v1842, %v1841
      %v1852 = vpack.c.b16 %v1844, %v1843
      %1861 = vmatpush.bf16.msra.mxu0 %v1852
      %1862 = vmatpush.bf16.msra.mxu0 %v1851
      %1863 = vmatpush.bf16.msra.mxu0 %v1850
      %1864 = vmatpush.bf16.msra.mxu0 %v1849
      %1865 = vmatpush.bf16.msra.mxu0 %v1848
      %1866 = vmatpush.bf16.msra.mxu0 %v1847
      %1867 = vmatpush.bf16.msra.mxu0 %v1846
      %1868 = vmatpush.bf16.msra.mxu0 %v1845
      %1869 = vmatmul.bf16.gmra.mxu0 %v1781
      %v1870 = vpop.f32.mrf.mxu0
      %v1871 = vadd.f32 0.0, %v1870
      %v1872 = vpop.f32.mrf.mxu0
      %v1873 = vadd.f32 0.0, %v1872
      %1874 = vmatmul.bf16.gmra.mxu0 %v1782
      %v1875 = vpop.f32.mrf.mxu0
      %v1876 = vadd.f32 0.0, %v1875
      %v1877 = vpop.f32.mrf.mxu0
      %v1878 = vadd.f32 0.0, %v1877
      %1879 = vmatmul.bf16.gmra.mxu0 %v1783
      %v1880 = vpop.f32.mrf.mxu0
      %v1881 = vadd.f32 0.0, %v1880
      %v1882 = vpop.f32.mrf.mxu0
      %v1883 = vadd.f32 0.0, %v1882
      %1884 = vmatmul.bf16.gmra.mxu0 %v1784
      %v1885 = vpop.f32.mrf.mxu0
      %v1886 = vadd.f32 0.0, %v1885
      %v1887 = vpop.f32.mrf.mxu0
      %v1888 = vadd.f32 0.0, %v1887
      %1889 = vmatmul.bf16.gmra.mxu0 %v1785
      %v1890 = vpop.f32.mrf.mxu0
      %v1891 = vadd.f32 0.0, %v1890
      %v1892 = vpop.f32.mrf.mxu0
      %v1893 = vadd.f32 0.0, %v1892
      %1894 = vmatmul.bf16.gmra.mxu0 %v1786
      %v1895 = vpop.f32.mrf.mxu0
      %v1896 = vadd.f32 0.0, %v1895
      %v1897 = vpop.f32.mrf.mxu0
      %v1898 = vadd.f32 0.0, %v1897
      %1899 = vmatmul.bf16.gmra.mxu0 %v1787
      %v1900 = vpop.f32.mrf.mxu0
      %v1901 = vadd.f32 0.0, %v1900
      %v1902 = vpop.f32.mrf.mxu0
      %v1903 = vadd.f32 0.0, %v1902
      %1904 = vmatmul.bf16.gmra.mxu0 %v1788
      %v1905 = vpop.f32.mrf.mxu0
      %v1906 = vadd.f32 0.0, %v1905
      %v1907 = vpop.f32.mrf.mxu0
      %v1908 = vadd.f32 0.0, %v1907
      %1909 = vmatmul.bf16.gmra.mxu0 %v1789
      %v1910 = vpop.f32.mrf.mxu0
      %v1911 = vadd.f32 0.0, %v1910
      %v1912 = vpop.f32.mrf.mxu0
      %v1913 = vadd.f32 0.0, %v1912
      %1914 = vmatmul.bf16.gmra.mxu0 %v1790
      %v1915 = vpop.f32.mrf.mxu0
      %v1916 = vadd.f32 0.0, %v1915
      %v1917 = vpop.f32.mrf.mxu0
      %v1918 = vadd.f32 0.0, %v1917
      %1919 = vmatmul.bf16.gmra.mxu0 %v1791
      %v1920 = vpop.f32.mrf.mxu0
      %v1921 = vadd.f32 0.0, %v1920
      %v1922 = vpop.f32.mrf.mxu0
      %v1923 = vadd.f32 0.0, %v1922
      %1924 = vmatmul.bf16.gmra.mxu0 %v1792
      %v1925 = vpop.f32.mrf.mxu0
      %v1926 = vadd.f32 0.0, %v1925
      %v1927 = vpop.f32.mrf.mxu0
      %v1928 = vadd.f32 0.0, %v1927
      %1929 = vmatmul.bf16.gmra.mxu0 %v1793
      %v1930 = vpop.f32.mrf.mxu0
      %v1931 = vadd.f32 0.0, %v1930
      %v1932 = vpop.f32.mrf.mxu0
      %v1933 = vadd.f32 0.0, %v1932
      %1934 = vmatmul.bf16.gmra.mxu0 %v1794
      %v1935 = vpop.f32.mrf.mxu0
      %v1936 = vadd.f32 0.0, %v1935
      %v1937 = vpop.f32.mrf.mxu0
      %v1938 = vadd.f32 0.0, %v1937
      %1939 = vmatmul.bf16.gmra.mxu0 %v1795
      %v1940 = vpop.f32.mrf.mxu0
      %v1941 = vadd.f32 0.0, %v1940
      %v1942 = vpop.f32.mrf.mxu0
      %v1943 = vadd.f32 0.0, %v1942
      %1944 = vmatmul.bf16.gmra.mxu0 %v1796
      %v1945 = vpop.f32.mrf.mxu0
      %v1946 = vadd.f32 0.0, %v1945
      %v1947 = vpop.f32.mrf.mxu0
      %v1948 = vadd.f32 0.0, %v1947
      %1949 = vdwg.mxu0
      %v1950 = vadd.f32 %v1621, %v1871
      %v1951 = vadd.f32 %v1623, %v1873
      %v1952 = vadd.f32 %v1626, %v1876
      %v1953 = vadd.f32 %v1628, %v1878
      %v1954 = vadd.f32 %v1631, %v1881
      %v1955 = vadd.f32 %v1633, %v1883
      %v1956 = vadd.f32 %v1636, %v1886
      %v1957 = vadd.f32 %v1638, %v1888
      %v1958 = vadd.f32 %v1641, %v1891
      %v1959 = vadd.f32 %v1643, %v1893
      %v1960 = vadd.f32 %v1646, %v1896
      %v1961 = vadd.f32 %v1648, %v1898
      %v1962 = vadd.f32 %v1651, %v1901
      %v1963 = vadd.f32 %v1653, %v1903
      %v1964 = vadd.f32 %v1656, %v1906
      %v1965 = vadd.f32 %v1658, %v1908
      %v1966 = vadd.f32 %v1661, %v1911
      %v1967 = vadd.f32 %v1663, %v1913
      %v1968 = vadd.f32 %v1666, %v1916
      %v1969 = vadd.f32 %v1668, %v1918
      %v1970 = vadd.f32 %v1671, %v1921
      %v1971 = vadd.f32 %v1673, %v1923
      %v1972 = vadd.f32 %v1676, %v1926
      %v1973 = vadd.f32 %v1678, %v1928
      %v1974 = vadd.f32 %v1681, %v1931
      %v1975 = vadd.f32 %v1683, %v1933
      %v1976 = vadd.f32 %v1686, %v1936
      %v1977 = vadd.f32 %v1688, %v1938
      %v1978 = vadd.f32 %v1691, %v1941
      %v1979 = vadd.f32 %v1693, %v1943
      %v1980 = vadd.f32 %v1696, %v1946
      %v1981 = vadd.f32 %v1698, %v1948
      %s1982 = scalar_lea.vmem %s5, 192
      %v1983 = vld [vmem:[%s1982] sm:$0xf]
      %v1984 = vld [vmem:[%s1982 + $0x4] sm:$0xf]
      %v1985 = vld [vmem:[%s1982 + $0x8] sm:$0xf]
      %v1986 = vld [vmem:[%s1982 + $0xc] sm:$0xf]
      %v1987 = vld [vmem:[%s1982 + $0x10] sm:$0xf]
      %v1988 = vld [vmem:[%s1982 + $0x14] sm:$0xf]
      %v1989 = vld [vmem:[%s1982 + $0x18] sm:$0xf]
      %v1990 = vld [vmem:[%s1982 + $0x1c] sm:$0xf]
      %v1991 = vld [vmem:[%s1982 + $0x20] sm:$0xf]
      %v1992 = vld [vmem:[%s1982 + $0x24] sm:$0xf]
      %v1993 = vld [vmem:[%s1982 + $0x28] sm:$0xf]
      %v1994 = vld [vmem:[%s1982 + $0x2c] sm:$0xf]
      %v1995 = vld [vmem:[%s1982 + $0x30] sm:$0xf]
      %v1996 = vld [vmem:[%s1982 + $0x34] sm:$0xf]
      %v1997 = vld [vmem:[%s1982 + $0x38] sm:$0xf]
      %v1998 = vld [vmem:[%s1982 + $0x3c] sm:$0xf]
      %v2001 = vunpack.c.l.b16 %v943
      %v2002 = vunpack.c.l.b16 %v944
      %v2003 = vpack.c.b16 %v2002, %v2001
      %v2021 = vunpack.c.l.b16 %v1983
      %v2022 = vunpack.c.l.b16 %v1984
      %v2023 = vunpack.c.l.b16 %v1985
      %v2024 = vunpack.c.l.b16 %v1986
      %v2025 = vunpack.c.l.b16 %v1987
      %v2026 = vunpack.c.l.b16 %v1988
      %v2027 = vunpack.c.l.b16 %v1989
      %v2028 = vunpack.c.l.b16 %v1990
      %v2029 = vunpack.c.l.b16 %v1991
      %v2030 = vunpack.c.l.b16 %v1992
      %v2031 = vunpack.c.l.b16 %v1993
      %v2032 = vunpack.c.l.b16 %v1994
      %v2033 = vunpack.c.l.b16 %v1995
      %v2034 = vunpack.c.l.b16 %v1996
      %v2035 = vunpack.c.l.b16 %v1997
      %v2036 = vunpack.c.l.b16 %v1998
      %v2037 = vpack.c.b16 %v2022, %v2021
      %v2038 = vpack.c.b16 %v2024, %v2023
      %v2039 = vpack.c.b16 %v2026, %v2025
      %v2040 = vpack.c.b16 %v2028, %v2027
      %v2041 = vpack.c.b16 %v2030, %v2029
      %v2042 = vpack.c.b16 %v2032, %v2031
      %v2043 = vpack.c.b16 %v2034, %v2033
      %v2044 = vpack.c.b16 %v2036, %v2035
      %2053 = vmatpush.bf16.msra.mxu0 %v2044
      %2054 = vmatpush.bf16.msra.mxu0 %v2043
      %2055 = vmatpush.bf16.msra.mxu0 %v2042
      %2056 = vmatpush.bf16.msra.mxu0 %v2041
      %2057 = vmatpush.bf16.msra.mxu0 %v2040
      %2058 = vmatpush.bf16.msra.mxu0 %v2039
      %2059 = vmatpush.bf16.msra.mxu0 %v2038
      %2060 = vmatpush.bf16.msra.mxu0 %v2037
      %2061 = vmatmul.bf16.gmra.mxu0 %v1532
      %v2062 = vpop.f32.mrf.mxu0
      %v2063 = vadd.f32 0.0, %v2062
      %v2064 = vpop.f32.mrf.mxu0
      %v2065 = vadd.f32 0.0, %v2064
      %2066 = vmatmul.bf16.gmra.mxu0 %v1533
      %v2067 = vpop.f32.mrf.mxu0
      %v2068 = vadd.f32 0.0, %v2067
      %v2069 = vpop.f32.mrf.mxu0
      %v2070 = vadd.f32 0.0, %v2069
      %2071 = vmatmul.bf16.gmra.mxu0 %v1534
      %v2072 = vpop.f32.mrf.mxu0
      %v2073 = vadd.f32 0.0, %v2072
      %v2074 = vpop.f32.mrf.mxu0
      %v2075 = vadd.f32 0.0, %v2074
      %2076 = vmatmul.bf16.gmra.mxu0 %v1535
      %v2077 = vpop.f32.mrf.mxu0
      %v2078 = vadd.f32 0.0, %v2077
      %v2079 = vpop.f32.mrf.mxu0
      %v2080 = vadd.f32 0.0, %v2079
      %2081 = vmatmul.bf16.gmra.mxu0 %v1536
      %v2082 = vpop.f32.mrf.mxu0
      %v2083 = vadd.f32 0.0, %v2082
      %v2084 = vpop.f32.mrf.mxu0
      %v2085 = vadd.f32 0.0, %v2084
      %2086 = vmatmul.bf16.gmra.mxu0 %v1537
      %v2087 = vpop.f32.mrf.mxu0
      %v2088 = vadd.f32 0.0, %v2087
      %v2089 = vpop.f32.mrf.mxu0
      %v2090 = vadd.f32 0.0, %v2089
      %2091 = vmatmul.bf16.gmra.mxu0 %v1538
      %v2092 = vpop.f32.mrf.mxu0
      %v2093 = vadd.f32 0.0, %v2092
      %v2094 = vpop.f32.mrf.mxu0
      %v2095 = vadd.f32 0.0, %v2094
      %2096 = vmatmul.bf16.gmra.mxu0 %v1539
      %v2097 = vpop.f32.mrf.mxu0
      %v2098 = vadd.f32 0.0, %v2097
      %v2099 = vpop.f32.mrf.mxu0
      %v2100 = vadd.f32 0.0, %v2099
      %2101 = vmatmul.bf16.gmra.mxu0 %v1540
      %v2102 = vpop.f32.mrf.mxu0
      %v2103 = vadd.f32 0.0, %v2102
      %v2104 = vpop.f32.mrf.mxu0
      %v2105 = vadd.f32 0.0, %v2104
      %2106 = vmatmul.bf16.gmra.mxu0 %v1541
      %v2107 = vpop.f32.mrf.mxu0
      %v2108 = vadd.f32 0.0, %v2107
      %v2109 = vpop.f32.mrf.mxu0
      %v2110 = vadd.f32 0.0, %v2109
      %2111 = vmatmul.bf16.gmra.mxu0 %v1542
      %v2112 = vpop.f32.mrf.mxu0
      %v2113 = vadd.f32 0.0, %v2112
      %v2114 = vpop.f32.mrf.mxu0
      %v2115 = vadd.f32 0.0, %v2114
      %2116 = vmatmul.bf16.gmra.mxu0 %v1543
      %v2117 = vpop.f32.mrf.mxu0
      %v2118 = vadd.f32 0.0, %v2117
      %v2119 = vpop.f32.mrf.mxu0
      %v2120 = vadd.f32 0.0, %v2119
      %2121 = vmatmul.bf16.gmra.mxu0 %v1544
      %v2122 = vpop.f32.mrf.mxu0
      %v2123 = vadd.f32 0.0, %v2122
      %v2124 = vpop.f32.mrf.mxu0
      %v2125 = vadd.f32 0.0, %v2124
      %2126 = vmatmul.bf16.gmra.mxu0 %v1545
      %v2127 = vpop.f32.mrf.mxu0
      %v2128 = vadd.f32 0.0, %v2127
      %v2129 = vpop.f32.mrf.mxu0
      %v2130 = vadd.f32 0.0, %v2129
      %2131 = vmatmul.bf16.gmra.mxu0 %v1546
      %v2132 = vpop.f32.mrf.mxu0
      %v2133 = vadd.f32 0.0, %v2132
      %v2134 = vpop.f32.mrf.mxu0
      %v2135 = vadd.f32 0.0, %v2134
      %2136 = vmatmul.bf16.gmra.mxu0 %v2003
      %v2137 = vpop.f32.mrf.mxu0
      %v2138 = vadd.f32 0.0, %v2137
      %v2139 = vpop.f32.mrf.mxu0
      %v2140 = vadd.f32 0.0, %v2139
      %2141 = vdwg.mxu0
      %v2142 = vadd.f32 %v1950, %v2063
      %v2143 = vadd.f32 %v1951, %v2065
      %v2144 = vadd.f32 %v1952, %v2068
      %v2145 = vadd.f32 %v1953, %v2070
      %v2146 = vadd.f32 %v1954, %v2073
      %v2147 = vadd.f32 %v1955, %v2075
      %v2148 = vadd.f32 %v1956, %v2078
      %v2149 = vadd.f32 %v1957, %v2080
      %v2150 = vadd.f32 %v1958, %v2083
      %v2151 = vadd.f32 %v1959, %v2085
      %v2152 = vadd.f32 %v1960, %v2088
      %v2153 = vadd.f32 %v1961, %v2090
      %v2154 = vadd.f32 %v1962, %v2093
      %v2155 = vadd.f32 %v1963, %v2095
      %v2156 = vadd.f32 %v1964, %v2098
      %v2157 = vadd.f32 %v1965, %v2100
      %v2158 = vadd.f32 %v1966, %v2103
      %v2159 = vadd.f32 %v1967, %v2105
      %v2160 = vadd.f32 %v1968, %v2108
      %v2161 = vadd.f32 %v1969, %v2110
      %v2162 = vadd.f32 %v1970, %v2113
      %v2163 = vadd.f32 %v1971, %v2115
      %v2164 = vadd.f32 %v1972, %v2118
      %v2165 = vadd.f32 %v1973, %v2120
      %v2166 = vadd.f32 %v1974, %v2123
      %v2167 = vadd.f32 %v1975, %v2125
      %v2168 = vadd.f32 %v1976, %v2128
      %v2169 = vadd.f32 %v1977, %v2130
      %v2170 = vadd.f32 %v1978, %v2133
      %v2171 = vadd.f32 %v1979, %v2135
      %v2172 = vadd.f32 %v1980, %v2138
      %v2173 = vadd.f32 %v1981, %v2140
      %s2174 = scalar_lea.vmem %s5, 256
      %v2175 = vld [vmem:[%s2174] sm:$0xf]
      %v2176 = vld [vmem:[%s2174 + $0x4] sm:$0xf]
      %v2177 = vld [vmem:[%s2174 + $0x8] sm:$0xf]
      %v2178 = vld [vmem:[%s2174 + $0xc] sm:$0xf]
      %v2179 = vld [vmem:[%s2174 + $0x10] sm:$0xf]
      %v2180 = vld [vmem:[%s2174 + $0x14] sm:$0xf]
      %v2181 = vld [vmem:[%s2174 + $0x18] sm:$0xf]
      %v2182 = vld [vmem:[%s2174 + $0x1c] sm:$0xf]
      %v2183 = vld [vmem:[%s2174 + $0x20] sm:$0xf]
      %v2184 = vld [vmem:[%s2174 + $0x24] sm:$0xf]
      %v2185 = vld [vmem:[%s2174 + $0x28] sm:$0xf]
      %v2186 = vld [vmem:[%s2174 + $0x2c] sm:$0xf]
      %v2187 = vld [vmem:[%s2174 + $0x30] sm:$0xf]
      %v2188 = vld [vmem:[%s2174 + $0x34] sm:$0xf]
      %v2189 = vld [vmem:[%s2174 + $0x38] sm:$0xf]
      %v2190 = vld [vmem:[%s2174 + $0x3c] sm:$0xf]
      %v2193 = vunpack.c.l.b16 %v1070
      %v2194 = vunpack.c.l.b16 %v1071
      %v2195 = vpack.c.b16 %v2194, %v2193
      %v2213 = vunpack.c.l.b16 %v2175
      %v2214 = vunpack.c.l.b16 %v2176
      %v2215 = vunpack.c.l.b16 %v2177
      %v2216 = vunpack.c.l.b16 %v2178
      %v2217 = vunpack.c.l.b16 %v2179
      %v2218 = vunpack.c.l.b16 %v2180
      %v2219 = vunpack.c.l.b16 %v2181
      %v2220 = vunpack.c.l.b16 %v2182
      %v2221 = vunpack.c.l.b16 %v2183
      %v2222 = vunpack.c.l.b16 %v2184
      %v2223 = vunpack.c.l.b16 %v2185
      %v2224 = vunpack.c.l.b16 %v2186
      %v2225 = vunpack.c.l.b16 %v2187
      %v2226 = vunpack.c.l.b16 %v2188
      %v2227 = vunpack.c.l.b16 %v2189
      %v2228 = vunpack.c.l.b16 %v2190
      %v2229 = vpack.c.b16 %v2214, %v2213
      %v2230 = vpack.c.b16 %v2216, %v2215
      %v2231 = vpack.c.b16 %v2218, %v2217
      %v2232 = vpack.c.b16 %v2220, %v2219
      %v2233 = vpack.c.b16 %v2222, %v2221
      %v2234 = vpack.c.b16 %v2224, %v2223
      %v2235 = vpack.c.b16 %v2226, %v2225
      %v2236 = vpack.c.b16 %v2228, %v2227
      %2245 = vmatpush.bf16.msra.mxu0 %v2236
      %2246 = vmatpush.bf16.msra.mxu0 %v2235
      %2247 = vmatpush.bf16.msra.mxu0 %v2234
      %2248 = vmatpush.bf16.msra.mxu0 %v2233
      %2249 = vmatpush.bf16.msra.mxu0 %v2232
      %2250 = vmatpush.bf16.msra.mxu0 %v2231
      %2251 = vmatpush.bf16.msra.mxu0 %v2230
      %2252 = vmatpush.bf16.msra.mxu0 %v2229
      %2253 = vmatmul.bf16.gmra.mxu0 %v1299
      %v2254 = vpop.f32.mrf.mxu0
      %v2255 = vadd.f32 0.0, %v2254
      %v2256 = vpop.f32.mrf.mxu0
      %v2257 = vadd.f32 0.0, %v2256
      %2258 = vmatmul.bf16.gmra.mxu0 %v1300
      %v2259 = vpop.f32.mrf.mxu0
      %v2260 = vadd.f32 0.0, %v2259
      %v2261 = vpop.f32.mrf.mxu0
      %v2262 = vadd.f32 0.0, %v2261
      %2263 = vmatmul.bf16.gmra.mxu0 %v1301
      %v2264 = vpop.f32.mrf.mxu0
      %v2265 = vadd.f32 0.0, %v2264
      %v2266 = vpop.f32.mrf.mxu0
      %v2267 = vadd.f32 0.0, %v2266
      %2268 = vmatmul.bf16.gmra.mxu0 %v1302
      %v2269 = vpop.f32.mrf.mxu0
      %v2270 = vadd.f32 0.0, %v2269
      %v2271 = vpop.f32.mrf.mxu0
      %v2272 = vadd.f32 0.0, %v2271
      %2273 = vmatmul.bf16.gmra.mxu0 %v1303
      %v2274 = vpop.f32.mrf.mxu0
      %v2275 = vadd.f32 0.0, %v2274
      %v2276 = vpop.f32.mrf.mxu0
      %v2277 = vadd.f32 0.0, %v2276
      %2278 = vmatmul.bf16.gmra.mxu0 %v1304
      %v2279 = vpop.f32.mrf.mxu0
      %v2280 = vadd.f32 0.0, %v2279
      %v2281 = vpop.f32.mrf.mxu0
      %v2282 = vadd.f32 0.0, %v2281
      %2283 = vmatmul.bf16.gmra.mxu0 %v1305
      %v2284 = vpop.f32.mrf.mxu0
      %v2285 = vadd.f32 0.0, %v2284
      %v2286 = vpop.f32.mrf.mxu0
      %v2287 = vadd.f32 0.0, %v2286
      %2288 = vmatmul.bf16.gmra.mxu0 %v1306
      %v2289 = vpop.f32.mrf.mxu0
      %v2290 = vadd.f32 0.0, %v2289
      %v2291 = vpop.f32.mrf.mxu0
      %v2292 = vadd.f32 0.0, %v2291
      %2293 = vmatmul.bf16.gmra.mxu0 %v1307
      %v2294 = vpop.f32.mrf.mxu0
      %v2295 = vadd.f32 0.0, %v2294
      %v2296 = vpop.f32.mrf.mxu0
      %v2297 = vadd.f32 0.0, %v2296
      %2298 = vmatmul.bf16.gmra.mxu0 %v1308
      %v2299 = vpop.f32.mrf.mxu0
      %v2300 = vadd.f32 0.0, %v2299
      %v2301 = vpop.f32.mrf.mxu0
      %v2302 = vadd.f32 0.0, %v2301
      %2303 = vmatmul.bf16.gmra.mxu0 %v1309
      %v2304 = vpop.f32.mrf.mxu0
      %v2305 = vadd.f32 0.0, %v2304
      %v2306 = vpop.f32.mrf.mxu0
      %v2307 = vadd.f32 0.0, %v2306
      %2308 = vmatmul.bf16.gmra.mxu0 %v1310
      %v2309 = vpop.f32.mrf.mxu0
      %v2310 = vadd.f32 0.0, %v2309
      %v2311 = vpop.f32.mrf.mxu0
      %v2312 = vadd.f32 0.0, %v2311
      %2313 = vmatmul.bf16.gmra.mxu0 %v1311
      %v2314 = vpop.f32.mrf.mxu0
      %v2315 = vadd.f32 0.0, %v2314
      %v2316 = vpop.f32.mrf.mxu0
      %v2317 = vadd.f32 0.0, %v2316
      %2318 = vmatmul.bf16.gmra.mxu0 %v1312
      %v2319 = vpop.f32.mrf.mxu0
      %v2320 = vadd.f32 0.0, %v2319
      %v2321 = vpop.f32.mrf.mxu0
      %v2322 = vadd.f32 0.0, %v2321
      %2323 = vmatmul.bf16.gmra.mxu0 %v1313
      %v2324 = vpop.f32.mrf.mxu0
      %v2325 = vadd.f32 0.0, %v2324
      %v2326 = vpop.f32.mrf.mxu0
      %v2327 = vadd.f32 0.0, %v2326
      %2328 = vmatmul.bf16.gmra.mxu0 %v2195
      %v2329 = vpop.f32.mrf.mxu0
      %v2330 = vadd.f32 0.0, %v2329
      %v2331 = vpop.f32.mrf.mxu0
      %v2332 = vadd.f32 0.0, %v2331
      %2333 = vdwg.mxu0
      %v2334 = vadd.f32 %v2142, %v2255
      %v2335 = vadd.f32 %v2143, %v2257
      %v2336 = vadd.f32 %v2144, %v2260
      %v2337 = vadd.f32 %v2145, %v2262
      %v2338 = vadd.f32 %v2146, %v2265
      %v2339 = vadd.f32 %v2147, %v2267
      %v2340 = vadd.f32 %v2148, %v2270
      %v2341 = vadd.f32 %v2149, %v2272
      %v2342 = vadd.f32 %v2150, %v2275
      %v2343 = vadd.f32 %v2151, %v2277
      %v2344 = vadd.f32 %v2152, %v2280
      %v2345 = vadd.f32 %v2153, %v2282
      %v2346 = vadd.f32 %v2154, %v2285
      %v2347 = vadd.f32 %v2155, %v2287
      %v2348 = vadd.f32 %v2156, %v2290
      %v2349 = vadd.f32 %v2157, %v2292
      %v2350 = vadd.f32 %v2158, %v2295
      %v2351 = vadd.f32 %v2159, %v2297
      %v2352 = vadd.f32 %v2160, %v2300
      %v2353 = vadd.f32 %v2161, %v2302
      %v2354 = vadd.f32 %v2162, %v2305
      %v2355 = vadd.f32 %v2163, %v2307
      %v2356 = vadd.f32 %v2164, %v2310
      %v2357 = vadd.f32 %v2165, %v2312
      %v2358 = vadd.f32 %v2166, %v2315
      %v2359 = vadd.f32 %v2167, %v2317
      %v2360 = vadd.f32 %v2168, %v2320
      %v2361 = vadd.f32 %v2169, %v2322
      %v2362 = vadd.f32 %v2170, %v2325
      %v2363 = vadd.f32 %v2171, %v2327
      %v2364 = vadd.f32 %v2172, %v2330
      %v2365 = vadd.f32 %v2173, %v2332
      %s2366 = scalar_lea.vmem %s5, 320
      %v2367 = vld [vmem:[%s2366] sm:$0xf]
      %v2368 = vld [vmem:[%s2366 + $0x4] sm:$0xf]
      %v2369 = vld [vmem:[%s2366 + $0x8] sm:$0xf]
      %v2370 = vld [vmem:[%s2366 + $0xc] sm:$0xf]
      %v2371 = vld [vmem:[%s2366 + $0x10] sm:$0xf]
      %v2372 = vld [vmem:[%s2366 + $0x14] sm:$0xf]
      %v2373 = vld [vmem:[%s2366 + $0x18] sm:$0xf]
      %v2374 = vld [vmem:[%s2366 + $0x1c] sm:$0xf]
      %v2375 = vld [vmem:[%s2366 + $0x20] sm:$0xf]
      %v2376 = vld [vmem:[%s2366 + $0x24] sm:$0xf]
      %v2377 = vld [vmem:[%s2366 + $0x28] sm:$0xf]
      %v2378 = vld [vmem:[%s2366 + $0x2c] sm:$0xf]
      %v2379 = vld [vmem:[%s2366 + $0x30] sm:$0xf]
      %v2380 = vld [vmem:[%s2366 + $0x34] sm:$0xf]
      %v2381 = vld [vmem:[%s2366 + $0x38] sm:$0xf]
      %v2382 = vld [vmem:[%s2366 + $0x3c] sm:$0xf]
      %v2385 = vunpack.c.l.b16 %v1197
      %v2386 = vunpack.c.l.b16 %v1198
      %v2387 = vpack.c.b16 %v2386, %v2385
      %v2405 = vunpack.c.l.b16 %v2367
      %v2406 = vunpack.c.l.b16 %v2368
      %v2407 = vunpack.c.l.b16 %v2369
      %v2408 = vunpack.c.l.b16 %v2370
      %v2409 = vunpack.c.l.b16 %v2371
      %v2410 = vunpack.c.l.b16 %v2372
      %v2411 = vunpack.c.l.b16 %v2373
      %v2412 = vunpack.c.l.b16 %v2374
      %v2413 = vunpack.c.l.b16 %v2375
      %v2414 = vunpack.c.l.b16 %v2376
      %v2415 = vunpack.c.l.b16 %v2377
      %v2416 = vunpack.c.l.b16 %v2378
      %v2417 = vunpack.c.l.b16 %v2379
      %v2418 = vunpack.c.l.b16 %v2380
      %v2419 = vunpack.c.l.b16 %v2381
      %v2420 = vunpack.c.l.b16 %v2382
      %v2421 = vpack.c.b16 %v2406, %v2405
      %v2422 = vpack.c.b16 %v2408, %v2407
      %v2423 = vpack.c.b16 %v2410, %v2409
      %v2424 = vpack.c.b16 %v2412, %v2411
      %v2425 = vpack.c.b16 %v2414, %v2413
      %v2426 = vpack.c.b16 %v2416, %v2415
      %v2427 = vpack.c.b16 %v2418, %v2417
      %v2428 = vpack.c.b16 %v2420, %v2419
      %2437 = vmatpush.bf16.msra.mxu0 %v2428
      %2438 = vmatpush.bf16.msra.mxu0 %v2427
      %2439 = vmatpush.bf16.msra.mxu0 %v2426
      %2440 = vmatpush.bf16.msra.mxu0 %v2425
      %2441 = vmatpush.bf16.msra.mxu0 %v2424
      %2442 = vmatpush.bf16.msra.mxu0 %v2423
      %2443 = vmatpush.bf16.msra.mxu0 %v2422
      %2444 = vmatpush.bf16.msra.mxu0 %v2421
      %2445 = vmatmul.bf16.gmra.mxu0 %v1782
      %v2446 = vpop.f32.mrf.mxu0
      %v2447 = vadd.f32 0.0, %v2446
      %v2448 = vpop.f32.mrf.mxu0
      %v2449 = vadd.f32 0.0, %v2448
      %2450 = vmatmul.bf16.gmra.mxu0 %v1783
      %v2451 = vpop.f32.mrf.mxu0
      %v2452 = vadd.f32 0.0, %v2451
      %v2453 = vpop.f32.mrf.mxu0
      %v2454 = vadd.f32 0.0, %v2453
      %2455 = vmatmul.bf16.gmra.mxu0 %v1784
      %v2456 = vpop.f32.mrf.mxu0
      %v2457 = vadd.f32 0.0, %v2456
      %v2458 = vpop.f32.mrf.mxu0
      %v2459 = vadd.f32 0.0, %v2458
      %2460 = vmatmul.bf16.gmra.mxu0 %v1785
      %v2461 = vpop.f32.mrf.mxu0
      %v2462 = vadd.f32 0.0, %v2461
      %v2463 = vpop.f32.mrf.mxu0
      %v2464 = vadd.f32 0.0, %v2463
      %2465 = vmatmul.bf16.gmra.mxu0 %v1786
      %v2466 = vpop.f32.mrf.mxu0
      %v2467 = vadd.f32 0.0, %v2466
      %v2468 = vpop.f32.mrf.mxu0
      %v2469 = vadd.f32 0.0, %v2468
      %2470 = vmatmul.bf16.gmra.mxu0 %v1787
      %v2471 = vpop.f32.mrf.mxu0
      %v2472 = vadd.f32 0.0, %v2471
      %v2473 = vpop.f32.mrf.mxu0
      %v2474 = vadd.f32 0.0, %v2473
      %2475 = vmatmul.bf16.gmra.mxu0 %v1788
      %v2476 = vpop.f32.mrf.mxu0
      %v2477 = vadd.f32 0.0, %v2476
      %v2478 = vpop.f32.mrf.mxu0
      %v2479 = vadd.f32 0.0, %v2478
      %2480 = vmatmul.bf16.gmra.mxu0 %v1789
      %v2481 = vpop.f32.mrf.mxu0
      %v2482 = vadd.f32 0.0, %v2481
      %v2483 = vpop.f32.mrf.mxu0
      %v2484 = vadd.f32 0.0, %v2483
      %2485 = vmatmul.bf16.gmra.mxu0 %v1790
      %v2486 = vpop.f32.mrf.mxu0
      %v2487 = vadd.f32 0.0, %v2486
      %v2488 = vpop.f32.mrf.mxu0
      %v2489 = vadd.f32 0.0, %v2488
      %2490 = vmatmul.bf16.gmra.mxu0 %v1791
      %v2491 = vpop.f32.mrf.mxu0
      %v2492 = vadd.f32 0.0, %v2491
      %v2493 = vpop.f32.mrf.mxu0
      %v2494 = vadd.f32 0.0, %v2493
      %2495 = vmatmul.bf16.gmra.mxu0 %v1792
      %v2496 = vpop.f32.mrf.mxu0
      %v2497 = vadd.f32 0.0, %v2496
      %v2498 = vpop.f32.mrf.mxu0
      %v2499 = vadd.f32 0.0, %v2498
      %2500 = vmatmul.bf16.gmra.mxu0 %v1793
      %v2501 = vpop.f32.mrf.mxu0
      %v2502 = vadd.f32 0.0, %v2501
      %v2503 = vpop.f32.mrf.mxu0
      %v2504 = vadd.f32 0.0, %v2503
      %2505 = vmatmul.bf16.gmra.mxu0 %v1794
      %v2506 = vpop.f32.mrf.mxu0
      %v2507 = vadd.f32 0.0, %v2506
      %v2508 = vpop.f32.mrf.mxu0
      %v2509 = vadd.f32 0.0, %v2508
      %2510 = vmatmul.bf16.gmra.mxu0 %v1795
      %v2511 = vpop.f32.mrf.mxu0
      %v2512 = vadd.f32 0.0, %v2511
      %v2513 = vpop.f32.mrf.mxu0
      %v2514 = vadd.f32 0.0, %v2513
      %2515 = vmatmul.bf16.gmra.mxu0 %v1796
      %v2516 = vpop.f32.mrf.mxu0
      %v2517 = vadd.f32 0.0, %v2516
      %v2518 = vpop.f32.mrf.mxu0
      %v2519 = vadd.f32 0.0, %v2518
      %2520 = vmatmul.bf16.gmra.mxu0 %v2387
      %v2521 = vpop.f32.mrf.mxu0
      %v2522 = vadd.f32 0.0, %v2521
      %v2523 = vpop.f32.mrf.mxu0
      %v2524 = vadd.f32 0.0, %v2523
      %2525 = vdwg.mxu0
      %v2526 = vadd.f32 %v2334, %v2447
      %v2527 = vadd.f32 %v2335, %v2449
      %v2528 = vadd.f32 %v2336, %v2452
      %v2529 = vadd.f32 %v2337, %v2454
      %v2530 = vadd.f32 %v2338, %v2457
      %v2531 = vadd.f32 %v2339, %v2459
      %v2532 = vadd.f32 %v2340, %v2462
      %v2533 = vadd.f32 %v2341, %v2464
      %v2534 = vadd.f32 %v2342, %v2467
      %v2535 = vadd.f32 %v2343, %v2469
      %v2536 = vadd.f32 %v2344, %v2472
      %v2537 = vadd.f32 %v2345, %v2474
      %v2538 = vadd.f32 %v2346, %v2477
      %v2539 = vadd.f32 %v2347, %v2479
      %v2540 = vadd.f32 %v2348, %v2482
      %v2541 = vadd.f32 %v2349, %v2484
      %v2542 = vadd.f32 %v2350, %v2487
      %v2543 = vadd.f32 %v2351, %v2489
      %v2544 = vadd.f32 %v2352, %v2492
      %v2545 = vadd.f32 %v2353, %v2494
      %v2546 = vadd.f32 %v2354, %v2497
      %v2547 = vadd.f32 %v2355, %v2499
      %v2548 = vadd.f32 %v2356, %v2502
      %v2549 = vadd.f32 %v2357, %v2504
      %v2550 = vadd.f32 %v2358, %v2507
      %v2551 = vadd.f32 %v2359, %v2509
      %v2552 = vadd.f32 %v2360, %v2512
      %v2553 = vadd.f32 %v2361, %v2514
      %v2554 = vadd.f32 %v2362, %v2517
      %v2555 = vadd.f32 %v2363, %v2519
      %v2556 = vadd.f32 %v2364, %v2522
      %v2557 = vadd.f32 %v2365, %v2524
      %s2558 = scalar_lea.vmem %s5, 384
      %v2559 = vld [vmem:[%s2558] sm:$0xf]
      %v2560 = vld [vmem:[%s2558 + $0x4] sm:$0xf]
      %v2561 = vld [vmem:[%s2558 + $0x8] sm:$0xf]
      %v2562 = vld [vmem:[%s2558 + $0xc] sm:$0xf]
      %v2563 = vld [vmem:[%s2558 + $0x10] sm:$0xf]
      %v2564 = vld [vmem:[%s2558 + $0x14] sm:$0xf]
      %v2565 = vld [vmem:[%s2558 + $0x18] sm:$0xf]
      %v2566 = vld [vmem:[%s2558 + $0x1c] sm:$0xf]
      %v2567 = vld [vmem:[%s2558 + $0x20] sm:$0xf]
      %v2568 = vld [vmem:[%s2558 + $0x24] sm:$0xf]
      %v2569 = vld [vmem:[%s2558 + $0x28] sm:$0xf]
      %v2570 = vld [vmem:[%s2558 + $0x2c] sm:$0xf]
      %v2571 = vld [vmem:[%s2558 + $0x30] sm:$0xf]
      %v2572 = vld [vmem:[%s2558 + $0x34] sm:$0xf]
      %v2573 = vld [vmem:[%s2558 + $0x38] sm:$0xf]
      %v2574 = vld [vmem:[%s2558 + $0x3c] sm:$0xf]
      %v2577 = vunpack.c.l.b16 %v945
      %v2578 = vunpack.c.l.b16 %v946
      %v2579 = vpack.c.b16 %v2578, %v2577
      %v2597 = vunpack.c.l.b16 %v2559
      %v2598 = vunpack.c.l.b16 %v2560
      %v2599 = vunpack.c.l.b16 %v2561
      %v2600 = vunpack.c.l.b16 %v2562
      %v2601 = vunpack.c.l.b16 %v2563
      %v2602 = vunpack.c.l.b16 %v2564
      %v2603 = vunpack.c.l.b16 %v2565
      %v2604 = vunpack.c.l.b16 %v2566
      %v2605 = vunpack.c.l.b16 %v2567
      %v2606 = vunpack.c.l.b16 %v2568
      %v2607 = vunpack.c.l.b16 %v2569
      %v2608 = vunpack.c.l.b16 %v2570
      %v2609 = vunpack.c.l.b16 %v2571
      %v2610 = vunpack.c.l.b16 %v2572
      %v2611 = vunpack.c.l.b16 %v2573
      %v2612 = vunpack.c.l.b16 %v2574
      %v2613 = vpack.c.b16 %v2598, %v2597
      %v2614 = vpack.c.b16 %v2600, %v2599
      %v2615 = vpack.c.b16 %v2602, %v2601
      %v2616 = vpack.c.b16 %v2604, %v2603
      %v2617 = vpack.c.b16 %v2606, %v2605
      %v2618 = vpack.c.b16 %v2608, %v2607
      %v2619 = vpack.c.b16 %v2610, %v2609
      %v2620 = vpack.c.b16 %v2612, %v2611
      %2629 = vmatpush.bf16.msra.mxu0 %v2620
      %2630 = vmatpush.bf16.msra.mxu0 %v2619
      %2631 = vmatpush.bf16.msra.mxu0 %v2618
      %2632 = vmatpush.bf16.msra.mxu0 %v2617
      %2633 = vmatpush.bf16.msra.mxu0 %v2616
      %2634 = vmatpush.bf16.msra.mxu0 %v2615
      %2635 = vmatpush.bf16.msra.mxu0 %v2614
      %2636 = vmatpush.bf16.msra.mxu0 %v2613
      %2637 = vmatmul.bf16.gmra.mxu0 %v1533
      %v2638 = vpop.f32.mrf.mxu0
      %v2639 = vadd.f32 0.0, %v2638
      %v2640 = vpop.f32.mrf.mxu0
      %v2641 = vadd.f32 0.0, %v2640
      %2642 = vmatmul.bf16.gmra.mxu0 %v1534
      %v2643 = vpop.f32.mrf.mxu0
      %v2644 = vadd.f32 0.0, %v2643
      %v2645 = vpop.f32.mrf.mxu0
      %v2646 = vadd.f32 0.0, %v2645
      %2647 = vmatmul.bf16.gmra.mxu0 %v1535
      %v2648 = vpop.f32.mrf.mxu0
      %v2649 = vadd.f32 0.0, %v2648
      %v2650 = vpop.f32.mrf.mxu0
      %v2651 = vadd.f32 0.0, %v2650
      %2652 = vmatmul.bf16.gmra.mxu0 %v1536
      %v2653 = vpop.f32.mrf.mxu0
      %v2654 = vadd.f32 0.0, %v2653
      %v2655 = vpop.f32.mrf.mxu0
      %v2656 = vadd.f32 0.0, %v2655
      %2657 = vmatmul.bf16.gmra.mxu0 %v1537
      %v2658 = vpop.f32.mrf.mxu0
      %v2659 = vadd.f32 0.0, %v2658
      %v2660 = vpop.f32.mrf.mxu0
      %v2661 = vadd.f32 0.0, %v2660
      %2662 = vmatmul.bf16.gmra.mxu0 %v1538
      %v2663 = vpop.f32.mrf.mxu0
      %v2664 = vadd.f32 0.0, %v2663
      %v2665 = vpop.f32.mrf.mxu0
      %v2666 = vadd.f32 0.0, %v2665
      %2667 = vmatmul.bf16.gmra.mxu0 %v1539
      %v2668 = vpop.f32.mrf.mxu0
      %v2669 = vadd.f32 0.0, %v2668
      %v2670 = vpop.f32.mrf.mxu0
      %v2671 = vadd.f32 0.0, %v2670
      %2672 = vmatmul.bf16.gmra.mxu0 %v1540
      %v2673 = vpop.f32.mrf.mxu0
      %v2674 = vadd.f32 0.0, %v2673
      %v2675 = vpop.f32.mrf.mxu0
      %v2676 = vadd.f32 0.0, %v2675
      %2677 = vmatmul.bf16.gmra.mxu0 %v1541
      %v2678 = vpop.f32.mrf.mxu0
      %v2679 = vadd.f32 0.0, %v2678
      %v2680 = vpop.f32.mrf.mxu0
      %v2681 = vadd.f32 0.0, %v2680
      %2682 = vmatmul.bf16.gmra.mxu0 %v1542
      %v2683 = vpop.f32.mrf.mxu0
      %v2684 = vadd.f32 0.0, %v2683
      %v2685 = vpop.f32.mrf.mxu0
      %v2686 = vadd.f32 0.0, %v2685
      %2687 = vmatmul.bf16.gmra.mxu0 %v1543
      %v2688 = vpop.f32.mrf.mxu0
      %v2689 = vadd.f32 0.0, %v2688
      %v2690 = vpop.f32.mrf.mxu0
      %v2691 = vadd.f32 0.0, %v2690
      %2692 = vmatmul.bf16.gmra.mxu0 %v1544
      %v2693 = vpop.f32.mrf.mxu0
      %v2694 = vadd.f32 0.0, %v2693
      %v2695 = vpop.f32.mrf.mxu0
      %v2696 = vadd.f32 0.0, %v2695
      %2697 = vmatmul.bf16.gmra.mxu0 %v1545
      %v2698 = vpop.f32.mrf.mxu0
      %v2699 = vadd.f32 0.0, %v2698
      %v2700 = vpop.f32.mrf.mxu0
      %v2701 = vadd.f32 0.0, %v2700
      %2702 = vmatmul.bf16.gmra.mxu0 %v1546
      %v2703 = vpop.f32.mrf.mxu0
      %v2704 = vadd.f32 0.0, %v2703
      %v2705 = vpop.f32.mrf.mxu0
      %v2706 = vadd.f32 0.0, %v2705
      %2707 = vmatmul.bf16.gmra.mxu0 %v2003
      %v2708 = vpop.f32.mrf.mxu0
      %v2709 = vadd.f32 0.0, %v2708
      %v2710 = vpop.f32.mrf.mxu0
      %v2711 = vadd.f32 0.0, %v2710
      %2712 = vmatmul.bf16.gmra.mxu0 %v2579
      %v2713 = vpop.f32.mrf.mxu0
      %v2714 = vadd.f32 0.0, %v2713
      %v2715 = vpop.f32.mrf.mxu0
      %v2716 = vadd.f32 0.0, %v2715
      %2717 = vdwg.mxu0
      %v2718 = vadd.f32 %v2526, %v2639
      %v2719 = vadd.f32 %v2527, %v2641
      %v2720 = vadd.f32 %v2528, %v2644
      %v2721 = vadd.f32 %v2529, %v2646
      %v2722 = vadd.f32 %v2530, %v2649
      %v2723 = vadd.f32 %v2531, %v2651
      %v2724 = vadd.f32 %v2532, %v2654
      %v2725 = vadd.f32 %v2533, %v2656
      %v2726 = vadd.f32 %v2534, %v2659
      %v2727 = vadd.f32 %v2535, %v2661
      %v2728 = vadd.f32 %v2536, %v2664
      %v2729 = vadd.f32 %v2537, %v2666
      %v2730 = vadd.f32 %v2538, %v2669
      %v2731 = vadd.f32 %v2539, %v2671
      %v2732 = vadd.f32 %v2540, %v2674
      %v2733 = vadd.f32 %v2541, %v2676
      %v2734 = vadd.f32 %v2542, %v2679
      %v2735 = vadd.f32 %v2543, %v2681
      %v2736 = vadd.f32 %v2544, %v2684
      %v2737 = vadd.f32 %v2545, %v2686
      %v2738 = vadd.f32 %v2546, %v2689
      %v2739 = vadd.f32 %v2547, %v2691
      %v2740 = vadd.f32 %v2548, %v2694
      %v2741 = vadd.f32 %v2549, %v2696
      %v2742 = vadd.f32 %v2550, %v2699
      %v2743 = vadd.f32 %v2551, %v2701
      %v2744 = vadd.f32 %v2552, %v2704
      %v2745 = vadd.f32 %v2553, %v2706
      %v2746 = vadd.f32 %v2554, %v2709
      %v2747 = vadd.f32 %v2555, %v2711
      %v2748 = vadd.f32 %v2556, %v2714
      %v2749 = vadd.f32 %v2557, %v2716
      %s2750 = scalar_lea.vmem %s5, 448
      %v2751 = vld [vmem:[%s2750] sm:$0xf]
      %v2752 = vld [vmem:[%s2750 + $0x4] sm:$0xf]
      %v2753 = vld [vmem:[%s2750 + $0x8] sm:$0xf]
      %v2754 = vld [vmem:[%s2750 + $0xc] sm:$0xf]
      %v2755 = vld [vmem:[%s2750 + $0x10] sm:$0xf]
      %v2756 = vld [vmem:[%s2750 + $0x14] sm:$0xf]
      %v2757 = vld [vmem:[%s2750 + $0x18] sm:$0xf]
      %v2758 = vld [vmem:[%s2750 + $0x1c] sm:$0xf]
      %v2759 = vld [vmem:[%s2750 + $0x20] sm:$0xf]
      %v2760 = vld [vmem:[%s2750 + $0x24] sm:$0xf]
      %v2761 = vld [vmem:[%s2750 + $0x28] sm:$0xf]
      %v2762 = vld [vmem:[%s2750 + $0x2c] sm:$0xf]
      %v2763 = vld [vmem:[%s2750 + $0x30] sm:$0xf]
      %v2764 = vld [vmem:[%s2750 + $0x34] sm:$0xf]
      %v2765 = vld [vmem:[%s2750 + $0x38] sm:$0xf]
      %v2766 = vld [vmem:[%s2750 + $0x3c] sm:$0xf]
      %v2769 = vunpack.c.l.b16 %v1072
      %v2770 = vunpack.c.l.b16 %v1073
      %v2771 = vpack.c.b16 %v2770, %v2769
      %v2789 = vunpack.c.l.b16 %v2751
      %v2790 = vunpack.c.l.b16 %v2752
      %v2791 = vunpack.c.l.b16 %v2753
      %v2792 = vunpack.c.l.b16 %v2754
      %v2793 = vunpack.c.l.b16 %v2755
      %v2794 = vunpack.c.l.b16 %v2756
      %v2795 = vunpack.c.l.b16 %v2757
      %v2796 = vunpack.c.l.b16 %v2758
      %v2797 = vunpack.c.l.b16 %v2759
      %v2798 = vunpack.c.l.b16 %v2760
      %v2799 = vunpack.c.l.b16 %v2761
      %v2800 = vunpack.c.l.b16 %v2762
      %v2801 = vunpack.c.l.b16 %v2763
      %v2802 = vunpack.c.l.b16 %v2764
      %v2803 = vunpack.c.l.b16 %v2765
      %v2804 = vunpack.c.l.b16 %v2766
      %v2805 = vpack.c.b16 %v2790, %v2789
      %v2806 = vpack.c.b16 %v2792, %v2791
      %v2807 = vpack.c.b16 %v2794, %v2793
      %v2808 = vpack.c.b16 %v2796, %v2795
      %v2809 = vpack.c.b16 %v2798, %v2797
      %v2810 = vpack.c.b16 %v2800, %v2799
      %v2811 = vpack.c.b16 %v2802, %v2801
      %v2812 = vpack.c.b16 %v2804, %v2803
      %2821 = vmatpush.bf16.msra.mxu0 %v2812
      %2822 = vmatpush.bf16.msra.mxu0 %v2811
      %2823 = vmatpush.bf16.msra.mxu0 %v2810
      %2824 = vmatpush.bf16.msra.mxu0 %v2809
      %2825 = vmatpush.bf16.msra.mxu0 %v2808
      %2826 = vmatpush.bf16.msra.mxu0 %v2807
      %2827 = vmatpush.bf16.msra.mxu0 %v2806
      %2828 = vmatpush.bf16.msra.mxu0 %v2805
      %2829 = vmatmul.bf16.gmra.mxu0 %v1300
      %v2830 = vpop.f32.mrf.mxu0
      %v2831 = vadd.f32 0.0, %v2830
      %v2832 = vpop.f32.mrf.mxu0
      %v2833 = vadd.f32 0.0, %v2832
      %2834 = vmatmul.bf16.gmra.mxu0 %v1301
      %v2835 = vpop.f32.mrf.mxu0
      %v2836 = vadd.f32 0.0, %v2835
      %v2837 = vpop.f32.mrf.mxu0
      %v2838 = vadd.f32 0.0, %v2837
      %2839 = vmatmul.bf16.gmra.mxu0 %v1302
      %v2840 = vpop.f32.mrf.mxu0
      %v2841 = vadd.f32 0.0, %v2840
      %v2842 = vpop.f32.mrf.mxu0
      %v2843 = vadd.f32 0.0, %v2842
      %2844 = vmatmul.bf16.gmra.mxu0 %v1303
      %v2845 = vpop.f32.mrf.mxu0
      %v2846 = vadd.f32 0.0, %v2845
      %v2847 = vpop.f32.mrf.mxu0
      %v2848 = vadd.f32 0.0, %v2847
      %2849 = vmatmul.bf16.gmra.mxu0 %v1304
      %v2850 = vpop.f32.mrf.mxu0
      %v2851 = vadd.f32 0.0, %v2850
      %v2852 = vpop.f32.mrf.mxu0
      %v2853 = vadd.f32 0.0, %v2852
      %2854 = vmatmul.bf16.gmra.mxu0 %v1305
      %v2855 = vpop.f32.mrf.mxu0
      %v2856 = vadd.f32 0.0, %v2855
      %v2857 = vpop.f32.mrf.mxu0
      %v2858 = vadd.f32 0.0, %v2857
      %2859 = vmatmul.bf16.gmra.mxu0 %v1306
      %v2860 = vpop.f32.mrf.mxu0
      %v2861 = vadd.f32 0.0, %v2860
      %v2862 = vpop.f32.mrf.mxu0
      %v2863 = vadd.f32 0.0, %v2862
      %2864 = vmatmul.bf16.gmra.mxu0 %v1307
      %v2865 = vpop.f32.mrf.mxu0
      %v2866 = vadd.f32 0.0, %v2865
      %v2867 = vpop.f32.mrf.mxu0
      %v2868 = vadd.f32 0.0, %v2867
      %2869 = vmatmul.bf16.gmra.mxu0 %v1308
      %v2870 = vpop.f32.mrf.mxu0
      %v2871 = vadd.f32 0.0, %v2870
      %v2872 = vpop.f32.mrf.mxu0
      %v2873 = vadd.f32 0.0, %v2872
      %2874 = vmatmul.bf16.gmra.mxu0 %v1309
      %v2875 = vpop.f32.mrf.mxu0
      %v2876 = vadd.f32 0.0, %v2875
      %v2877 = vpop.f32.mrf.mxu0
      %v2878 = vadd.f32 0.0, %v2877
      %2879 = vmatmul.bf16.gmra.mxu0 %v1310
      %v2880 = vpop.f32.mrf.mxu0
      %v2881 = vadd.f32 0.0, %v2880
      %v2882 = vpop.f32.mrf.mxu0
      %v2883 = vadd.f32 0.0, %v2882
      %2884 = vmatmul.bf16.gmra.mxu0 %v1311
      %v2885 = vpop.f32.mrf.mxu0
      %v2886 = vadd.f32 0.0, %v2885
      %v2887 = vpop.f32.mrf.mxu0
      %v2888 = vadd.f32 0.0, %v2887
      %2889 = vmatmul.bf16.gmra.mxu0 %v1312
      %v2890 = vpop.f32.mrf.mxu0
      %v2891 = vadd.f32 0.0, %v2890
      %v2892 = vpop.f32.mrf.mxu0
      %v2893 = vadd.f32 0.0, %v2892
      %2894 = vmatmul.bf16.gmra.mxu0 %v1313
      %v2895 = vpop.f32.mrf.mxu0
      %v2896 = vadd.f32 0.0, %v2895
      %v2897 = vpop.f32.mrf.mxu0
      %v2898 = vadd.f32 0.0, %v2897
      %2899 = vmatmul.bf16.gmra.mxu0 %v2195
      %v2900 = vpop.f32.mrf.mxu0
      %v2901 = vadd.f32 0.0, %v2900
      %v2902 = vpop.f32.mrf.mxu0
      %v2903 = vadd.f32 0.0, %v2902
      %2904 = vmatmul.bf16.gmra.mxu0 %v2771
      %v2905 = vpop.f32.mrf.mxu0
      %v2906 = vadd.f32 0.0, %v2905
      %v2907 = vpop.f32.mrf.mxu0
      %v2908 = vadd.f32 0.0, %v2907
      %2909 = vdwg.mxu0
      %v2910 = vadd.f32 %v2718, %v2831
      %v2911 = vadd.f32 %v2719, %v2833
      %v2912 = vadd.f32 %v2720, %v2836
      %v2913 = vadd.f32 %v2721, %v2838
      %v2914 = vadd.f32 %v2722, %v2841
      %v2915 = vadd.f32 %v2723, %v2843
      %v2916 = vadd.f32 %v2724, %v2846
      %v2917 = vadd.f32 %v2725, %v2848
      %v2918 = vadd.f32 %v2726, %v2851
      %v2919 = vadd.f32 %v2727, %v2853
      %v2920 = vadd.f32 %v2728, %v2856
      %v2921 = vadd.f32 %v2729, %v2858
      %v2922 = vadd.f32 %v2730, %v2861
      %v2923 = vadd.f32 %v2731, %v2863
      %v2924 = vadd.f32 %v2732, %v2866
      %v2925 = vadd.f32 %v2733, %v2868
      %v2926 = vadd.f32 %v2734, %v2871
      %v2927 = vadd.f32 %v2735, %v2873
      %v2928 = vadd.f32 %v2736, %v2876
      %v2929 = vadd.f32 %v2737, %v2878
      %v2930 = vadd.f32 %v2738, %v2881
      %v2931 = vadd.f32 %v2739, %v2883
      %v2932 = vadd.f32 %v2740, %v2886
      %v2933 = vadd.f32 %v2741, %v2888
      %v2934 = vadd.f32 %v2742, %v2891
      %v2935 = vadd.f32 %v2743, %v2893
      %v2936 = vadd.f32 %v2744, %v2896
      %v2937 = vadd.f32 %v2745, %v2898
      %v2938 = vadd.f32 %v2746, %v2901
      %v2939 = vadd.f32 %v2747, %v2903
      %v2940 = vadd.f32 %v2748, %v2906
      %v2941 = vadd.f32 %v2749, %v2908
      %s2942 = scalar_lea.vmem %s5, 512
      %v2943 = vld [vmem:[%s2942] sm:$0xf]
      %v2944 = vld [vmem:[%s2942 + $0x4] sm:$0xf]
      %v2945 = vld [vmem:[%s2942 + $0x8] sm:$0xf]
      %v2946 = vld [vmem:[%s2942 + $0xc] sm:$0xf]
      %v2947 = vld [vmem:[%s2942 + $0x10] sm:$0xf]
      %v2948 = vld [vmem:[%s2942 + $0x14] sm:$0xf]
      %v2949 = vld [vmem:[%s2942 + $0x18] sm:$0xf]
      %v2950 = vld [vmem:[%s2942 + $0x1c] sm:$0xf]
      %v2951 = vld [vmem:[%s2942 + $0x20] sm:$0xf]
      %v2952 = vld [vmem:[%s2942 + $0x24] sm:$0xf]
      %v2953 = vld [vmem:[%s2942 + $0x28] sm:$0xf]
      %v2954 = vld [vmem:[%s2942 + $0x2c] sm:$0xf]
      %v2955 = vld [vmem:[%s2942 + $0x30] sm:$0xf]
      %v2956 = vld [vmem:[%s2942 + $0x34] sm:$0xf]
      %v2957 = vld [vmem:[%s2942 + $0x38] sm:$0xf]
      %v2958 = vld [vmem:[%s2942 + $0x3c] sm:$0xf]
      %v2961 = vunpack.c.l.b16 %v1199
      %v2962 = vunpack.c.l.b16 %v1200
      %v2963 = vpack.c.b16 %v2962, %v2961
      %v2981 = vunpack.c.l.b16 %v2943
      %v2982 = vunpack.c.l.b16 %v2944
      %v2983 = vunpack.c.l.b16 %v2945
      %v2984 = vunpack.c.l.b16 %v2946
      %v2985 = vunpack.c.l.b16 %v2947
      %v2986 = vunpack.c.l.b16 %v2948
      %v2987 = vunpack.c.l.b16 %v2949
      %v2988 = vunpack.c.l.b16 %v2950
      %v2989 = vunpack.c.l.b16 %v2951
      %v2990 = vunpack.c.l.b16 %v2952
      %v2991 = vunpack.c.l.b16 %v2953
      %v2992 = vunpack.c.l.b16 %v2954
      %v2993 = vunpack.c.l.b16 %v2955
      %v2994 = vunpack.c.l.b16 %v2956
      %v2995 = vunpack.c.l.b16 %v2957
      %v2996 = vunpack.c.l.b16 %v2958
      %v2997 = vpack.c.b16 %v2982, %v2981
      %v2998 = vpack.c.b16 %v2984, %v2983
      %v2999 = vpack.c.b16 %v2986, %v2985
      %v3000 = vpack.c.b16 %v2988, %v2987
      %v3001 = vpack.c.b16 %v2990, %v2989
      %v3002 = vpack.c.b16 %v2992, %v2991
      %v3003 = vpack.c.b16 %v2994, %v2993
      %v3004 = vpack.c.b16 %v2996, %v2995
      %3013 = vmatpush.bf16.msra.mxu0 %v3004
      %3014 = vmatpush.bf16.msra.mxu0 %v3003
      %3015 = vmatpush.bf16.msra.mxu0 %v3002
      %3016 = vmatpush.bf16.msra.mxu0 %v3001
      %3017 = vmatpush.bf16.msra.mxu0 %v3000
      %3018 = vmatpush.bf16.msra.mxu0 %v2999
      %3019 = vmatpush.bf16.msra.mxu0 %v2998
      %3020 = vmatpush.bf16.msra.mxu0 %v2997
      %3021 = vmatmul.bf16.gmra.mxu0 %v1783
      %v3022 = vpop.f32.mrf.mxu0
      %v3023 = vadd.f32 0.0, %v3022
      %v3024 = vpop.f32.mrf.mxu0
      %v3025 = vadd.f32 0.0, %v3024
      %3026 = vmatmul.bf16.gmra.mxu0 %v1784
      %v3027 = vpop.f32.mrf.mxu0
      %v3028 = vadd.f32 0.0, %v3027
      %v3029 = vpop.f32.mrf.mxu0
      %v3030 = vadd.f32 0.0, %v3029
      %3031 = vmatmul.bf16.gmra.mxu0 %v1785
      %v3032 = vpop.f32.mrf.mxu0
      %v3033 = vadd.f32 0.0, %v3032
      %v3034 = vpop.f32.mrf.mxu0
      %v3035 = vadd.f32 0.0, %v3034
      %3036 = vmatmul.bf16.gmra.mxu0 %v1786
      %v3037 = vpop.f32.mrf.mxu0
      %v3038 = vadd.f32 0.0, %v3037
      %v3039 = vpop.f32.mrf.mxu0
      %v3040 = vadd.f32 0.0, %v3039
      %3041 = vmatmul.bf16.gmra.mxu0 %v1787
      %v3042 = vpop.f32.mrf.mxu0
      %v3043 = vadd.f32 0.0, %v3042
      %v3044 = vpop.f32.mrf.mxu0
      %v3045 = vadd.f32 0.0, %v3044
      %3046 = vmatmul.bf16.gmra.mxu0 %v1788
      %v3047 = vpop.f32.mrf.mxu0
      %v3048 = vadd.f32 0.0, %v3047
      %v3049 = vpop.f32.mrf.mxu0
      %v3050 = vadd.f32 0.0, %v3049
      %3051 = vmatmul.bf16.gmra.mxu0 %v1789
      %v3052 = vpop.f32.mrf.mxu0
      %v3053 = vadd.f32 0.0, %v3052
      %v3054 = vpop.f32.mrf.mxu0
      %v3055 = vadd.f32 0.0, %v3054
      %3056 = vmatmul.bf16.gmra.mxu0 %v1790
      %v3057 = vpop.f32.mrf.mxu0
      %v3058 = vadd.f32 0.0, %v3057
      %v3059 = vpop.f32.mrf.mxu0
      %v3060 = vadd.f32 0.0, %v3059
      %3061 = vmatmul.bf16.gmra.mxu0 %v1791
      %v3062 = vpop.f32.mrf.mxu0
      %v3063 = vadd.f32 0.0, %v3062
      %v3064 = vpop.f32.mrf.mxu0
      %v3065 = vadd.f32 0.0, %v3064
      %3066 = vmatmul.bf16.gmra.mxu0 %v1792
      %v3067 = vpop.f32.mrf.mxu0
      %v3068 = vadd.f32 0.0, %v3067
      %v3069 = vpop.f32.mrf.mxu0
      %v3070 = vadd.f32 0.0, %v3069
      %3071 = vmatmul.bf16.gmra.mxu0 %v1793
      %v3072 = vpop.f32.mrf.mxu0
      %v3073 = vadd.f32 0.0, %v3072
      %v3074 = vpop.f32.mrf.mxu0
      %v3075 = vadd.f32 0.0, %v3074
      %3076 = vmatmul.bf16.gmra.mxu0 %v1794
      %v3077 = vpop.f32.mrf.mxu0
      %v3078 = vadd.f32 0.0, %v3077
      %v3079 = vpop.f32.mrf.mxu0
      %v3080 = vadd.f32 0.0, %v3079
      %3081 = vmatmul.bf16.gmra.mxu0 %v1795
      %v3082 = vpop.f32.mrf.mxu0
      %v3083 = vadd.f32 0.0, %v3082
      %v3084 = vpop.f32.mrf.mxu0
      %v3085 = vadd.f32 0.0, %v3084
      %3086 = vmatmul.bf16.gmra.mxu0 %v1796
      %v3087 = vpop.f32.mrf.mxu0
      %v3088 = vadd.f32 0.0, %v3087
      %v3089 = vpop.f32.mrf.mxu0
      %v3090 = vadd.f32 0.0, %v3089
      %3091 = vmatmul.bf16.gmra.mxu0 %v2387
      %v3092 = vpop.f32.mrf.mxu0
      %v3093 = vadd.f32 0.0, %v3092
      %v3094 = vpop.f32.mrf.mxu0
      %v3095 = vadd.f32 0.0, %v3094
      %3096 = vmatmul.bf16.gmra.mxu0 %v2963
      %v3097 = vpop.f32.mrf.mxu0
      %v3098 = vadd.f32 0.0, %v3097
      %v3099 = vpop.f32.mrf.mxu0
      %v3100 = vadd.f32 0.0, %v3099
      %3101 = vdwg.mxu0
      %v3102 = vadd.f32 %v2910, %v3023
      %v3103 = vadd.f32 %v2911, %v3025
      %v3104 = vadd.f32 %v2912, %v3028
      %v3105 = vadd.f32 %v2913, %v3030
      %v3106 = vadd.f32 %v2914, %v3033
      %v3107 = vadd.f32 %v2915, %v3035
      %v3108 = vadd.f32 %v2916, %v3038
      %v3109 = vadd.f32 %v2917, %v3040
      %v3110 = vadd.f32 %v2918, %v3043
      %v3111 = vadd.f32 %v2919, %v3045
      %v3112 = vadd.f32 %v2920, %v3048
      %v3113 = vadd.f32 %v2921, %v3050
      %v3114 = vadd.f32 %v2922, %v3053
      %v3115 = vadd.f32 %v2923, %v3055
      %v3116 = vadd.f32 %v2924, %v3058
      %v3117 = vadd.f32 %v2925, %v3060
      %v3118 = vadd.f32 %v2926, %v3063
      %v3119 = vadd.f32 %v2927, %v3065
      %v3120 = vadd.f32 %v2928, %v3068
      %v3121 = vadd.f32 %v2929, %v3070
      %v3122 = vadd.f32 %v2930, %v3073
      %v3123 = vadd.f32 %v2931, %v3075
      %v3124 = vadd.f32 %v2932, %v3078
      %v3125 = vadd.f32 %v2933, %v3080
      %v3126 = vadd.f32 %v2934, %v3083
      %v3127 = vadd.f32 %v2935, %v3085
      %v3128 = vadd.f32 %v2936, %v3088
      %v3129 = vadd.f32 %v2937, %v3090
      %v3130 = vadd.f32 %v2938, %v3093
      %v3131 = vadd.f32 %v2939, %v3095
      %v3132 = vadd.f32 %v2940, %v3098
      %v3133 = vadd.f32 %v2941, %v3100
      %v3134 = vpack.c.bf16 %v3102, %v3102
      %v3135 = vpack.c.bf16 %v3103, %v3103
      %v3136 = vpack.c.bf16 %v3104, %v3104
      %v3137 = vpack.c.bf16 %v3105, %v3105
      %v3138 = vpack.c.bf16 %v3106, %v3106
      %v3139 = vpack.c.bf16 %v3107, %v3107
      %v3140 = vpack.c.bf16 %v3108, %v3108
      %v3141 = vpack.c.bf16 %v3109, %v3109
      %v3142 = vpack.c.bf16 %v3110, %v3110
      %v3143 = vpack.c.bf16 %v3111, %v3111
      %v3144 = vpack.c.bf16 %v3112, %v3112
      %v3145 = vpack.c.bf16 %v3113, %v3113
      %v3146 = vpack.c.bf16 %v3114, %v3114
      %v3147 = vpack.c.bf16 %v3115, %v3115
      %v3148 = vpack.c.bf16 %v3116, %v3116
      %v3149 = vpack.c.bf16 %v3117, %v3117
      %v3150 = vpack.c.bf16 %v3118, %v3118
      %v3151 = vpack.c.bf16 %v3119, %v3119
      %v3152 = vpack.c.bf16 %v3120, %v3120
      %v3153 = vpack.c.bf16 %v3121, %v3121
      %v3154 = vpack.c.bf16 %v3122, %v3122
      %v3155 = vpack.c.bf16 %v3123, %v3123
      %v3156 = vpack.c.bf16 %v3124, %v3124
      %v3157 = vpack.c.bf16 %v3125, %v3125
      %v3158 = vpack.c.bf16 %v3126, %v3126
      %v3159 = vpack.c.bf16 %v3127, %v3127
      %v3160 = vpack.c.bf16 %v3128, %v3128
      %v3161 = vpack.c.bf16 %v3129, %v3129
      %v3162 = vpack.c.bf16 %v3130, %v3130
      %v3163 = vpack.c.bf16 %v3131, %v3131
      %v3164 = vpack.c.bf16 %v3132, %v3132
      %v3165 = vpack.c.bf16 %v3133, %v3133
      %3166 = vst [vmem:[%s251] sm:$0xf] %v3134
      %3167 = vst [vmem:[%s251 + $0x4] sm:$0xf] %v3135
      %3168 = vst [vmem:[%s251 + $0x8] sm:$0xf] %v3136
      %3169 = vst [vmem:[%s251 + $0xc] sm:$0xf] %v3137
      %3170 = vst [vmem:[%s251 + $0x10] sm:$0xf] %v3138
      %3171 = vst [vmem:[%s251 + $0x14] sm:$0xf] %v3139
      %3172 = vst [vmem:[%s251 + $0x18] sm:$0xf] %v3140
      %3173 = vst [vmem:[%s251 + $0x1c] sm:$0xf] %v3141
      %3174 = vst [vmem:[%s251 + $0x20] sm:$0xf] %v3142
      %3175 = vst [vmem:[%s251 + $0x24] sm:$0xf] %v3143
      %3176 = vst [vmem:[%s251 + $0x28] sm:$0xf] %v3144
      %3177 = vst [vmem:[%s251 + $0x2c] sm:$0xf] %v3145
      %3178 = vst [vmem:[%s251 + $0x30] sm:$0xf] %v3146
      %3179 = vst [vmem:[%s251 + $0x34] sm:$0xf] %v3147
      %3180 = vst [vmem:[%s251 + $0x38] sm:$0xf] %v3148
      %3181 = vst [vmem:[%s251 + $0x3c] sm:$0xf] %v3149
      %3182 = vst [vmem:[%s251 + $0x40] sm:$0xf] %v3150
      %3183 = vst [vmem:[%s251 + $0x44] sm:$0xf] %v3151
      %3184 = vst [vmem:[%s251 + $0x48] sm:$0xf] %v3152
      %3185 = vst [vmem:[%s251 + $0x4c] sm:$0xf] %v3153
      %3186 = vst [vmem:[%s251 + $0x50] sm:$0xf] %v3154
      %3187 = vst [vmem:[%s251 + $0x54] sm:$0xf] %v3155
      %3188 = vst [vmem:[%s251 + $0x58] sm:$0xf] %v3156
      %3189 = vst [vmem:[%s251 + $0x5c] sm:$0xf] %v3157
      %3190 = vst [vmem:[%s251 + $0x60] sm:$0xf] %v3158
      %3191 = vst [vmem:[%s251 + $0x64] sm:$0xf] %v3159
      %3192 = vst [vmem:[%s251 + $0x68] sm:$0xf] %v3160
      %3193 = vst [vmem:[%s251 + $0x6c] sm:$0xf] %v3161
      %3194 = vst [vmem:[%s251 + $0x70] sm:$0xf] %v3162
      %3195 = vst [vmem:[%s251 + $0x74] sm:$0xf] %v3163
      %3196 = vst [vmem:[%s251 + $0x78] sm:$0xf] %v3164
      %3197 = vst [vmem:[%s251 + $0x7c] sm:$0xf] %v3165
      %p3198 = scmp.lt.s32.totalorder %s17, 1
      %s3199 = scalar_select %p3198, %s17, 1
      %s3200 = smul.addr %s3199, 32
      %s3201 = smul.addr %s3200, 4
      %s3202 = scalar_lea.vmem %s6, %s3201
      // Predicated region
      $region45: #{_lambda_.1} parent=43 // pred_check
        %p3203 = pneg %p166
      $region46: #{_lambda_.1} parent=43 // pred_check_branch
        %3205 = sbr.rel (%p3203) target = $region48
      $region47: #{_lambda_.1} parent=43 // pred_region
        _
      $region48: #{_lambda_.1} parent=43 // pred_fallthru
        _
    $region44: #{_lambda_.1} parent=5 // pred_fallthru
      _
    %p3206 = scmp.le.s32.totalorder 2, %s12
    // Predicated region
    $region49: #{_lambda_.1} parent=5 // pred_check
      %p3207 = pneg %p3206
    $region50: #{_lambda_.1} parent=5 // pred_check_branch
      %3209 = sbr.rel (%p3207) target = $region52
    $region51: #{_lambda_.1} parent=5 // pred_region
      %s3210 = ssub.s32 %s12, 2
      // Predicated region
      $region53: #{_lambda_.1} parent=51 // pred_check
        %p3211 = pneg %p172
      $region54: #{_lambda_.1} parent=51 // pred_check_branch
        %3213 = sbr.rel (%p3211) target = $region56
      $region55: #{_lambda_.1} parent=51 // pred_region
        %p3214 = scmp.lt.s32.totalorder %s18, 1
        %s3215 = scalar_select %p3214, %s18, 1
        %s3216 = smul.addr %s3215, 32
        %s3217 = smul.addr %s3216, 4
        %s3218 = scalar_lea.vmem %s6, %s3217
      $region56: #{_lambda_.1} parent=51 // pred_fallthru
        _
    $region52: #{_lambda_.1} parent=5 // pred_fallthru
      _
  $region6: #{_lambda_.1} parent=0 // loop_footer
    %s16 = sadd.s32 1, %s12
  $region7: #{_lambda_.1} parent=0 // loop_footer_branch
    %11 = sbr.rel target = $region3
  $region8: #{_lambda_.1} parent=0 // loop_exit
    _

</llo_original>
